<compile_context>
chip_gen: v6e
topology: v6e:2x2x1
jax: 0.10.0
libtpu: 0.0.40
codegen_flags: <defaults>
</compile_context>

<pallas_src>
import jax
import jax.numpy as jnp
from jax.experimental import pallas as pl
from jax.experimental.pallas import tpu as pltpu

# HBM storage dtype of intermediate activations and MXU operand dtype.
# Set both to jnp.float32 for bit-close parity with a pure-f32 reference.
ACT_DTYPE = jnp.bfloat16
MXU_DTYPE = jnp.bfloat16

_VMEM_LIMIT = 32 * 1024 * 1024   # explicit (v5e's default scoped limit is 16 MiB)


def _round_up(x, m):
    return (x + m - 1) // m * m


# ----------------------------------------------------------------------------
# Kernel 1/2: fused [optional BN+ReLU of previous layer] -> 3x3 conv -> stats.
# One image per grid step; conv output stored lane-dense as (Cout, H*W).
# ----------------------------------------------------------------------------
def _make_conv_kernel(H, W, Cin, Cout, Mg, apply_input_bn):
    HW = H * W

    def conv_body(x_ref, w_ref, masks_ref, scale_ref, shift_ref,
                  y_ref, stats_ref, xflat_ref):
        # x_ref     : (1, Cin, H*W)          flat NCHW input tile
        # w_ref     : (9, Cout, Cin)         conv taps, t = (dh+1)*3 + (dw+1)
        # masks_ref : (2, H*W)               [left-valid, right-valid] col masks
        # scale_ref : (Cin, 1)               prev layer's BN scale (if fused)
        # shift_ref : (Cin, 1)               prev layer's BN shift (if fused)
        # y_ref     : (1, Cout, H*W)         lane-dense conv output (ACT_DTYPE)
        # stats_ref : (1, Cout, 2)           per-image [sum, sum_sq] per channel
        # xflat_ref : VMEM (Cin, Mg+HW+Mg)   flat scratch with zero margins
        x = x_ref[0].astype(jnp.float32)                        # (Cin, HW)
        if apply_input_bn:
            # Previous layer's BatchNorm + ReLU folded into this conv's input
            # path: saves a full HBM read + write of the activation.
            x = jnp.maximum(x * scale_ref[...] + shift_ref[...], 0.0)

        # Zero margins (vertical halo) + lane-dense interior store.  Margins
        # are Mg wide (lane-aligned, >= W+1) so vertically-shifted slab reads
        # fall on zeros.  They are rewritten every step (instead of a
        # program_id==0 zero-once) so the kernel stays correct even if the
        # parallel batch axis is sharded across cores (scratch is per-core);
        # the cost is ~2*Mg/HW of the interior store at real sizes.
        zeros_m = jnp.zeros((Cin, Mg), xflat_ref.dtype)
        xflat_ref[:, 0:Mg] = zeros_m
        xflat_ref[:, Mg + HW:Mg + HW + Mg] = zeros_m
        xflat_ref[:, Mg:Mg + HW] = x.astype(xflat_ref.dtype)    # lane-dense

        # 3x3 "same" conv as 9 accumulating MXU matmuls on shifted flat slabs
        # (no im2col, no reshape):
        #   out[o, q] += w[o, c, dh, dw] * x[c, q + dh*W + dw]
        # Vertically out-of-range reads land in the zero margins; horizontal
        # row-wrap is killed by the per-dw column masks (applied once per dw).
        acc = jnp.zeros((Cout, HW), jnp.float32)
        for dw in (-1, 0, 1):
            part = jnp.zeros((Cout, HW), jnp.float32)
            for dh in (-1, 0, 1):
                t = (dh + 1) * 3 + (dw + 1)
                start = Mg + dh * W + dw                        # static offset
                slab = xflat_ref[:, start:start + HW]           # (Cin, HW)
                part = part + jnp.dot(w_ref[t], slab,
                                      preferred_element_type=jnp.float32)
            if dw == -1:
                part = part * masks_ref[0:1, :]
            elif dw == 1:
                part = part * masks_ref[1:2, :]
            acc = acc + part

        y_ref[0] = acc.astype(y_ref.dtype)
        # BatchNorm statistics fused into the conv pass (one extra tiny block).
        # TODO(synk): at UNet scale, chunk this so acc / acc*acc never live as
        # full-width f32 temporaries, and store the stats lane-dense as (2, Cout).
        stats_ref[0, :, 0:1] = jnp.sum(acc, axis=1, keepdims=True)
        stats_ref[0, :, 1:2] = jnp.sum(acc * acc, axis=1, keepdims=True)

    if apply_input_bn:
        return conv_body

    def conv_body_no_bn(x_ref, w_ref, masks_ref, y_ref, stats_ref, xflat_ref):
        conv_body(x_ref, w_ref, masks_ref, None, None,
                  y_ref, stats_ref, xflat_ref)

    return conv_body_no_bn


def conv3x3_stats(x_flat, w_taps, col_masks, H, W, scale=None, shift=None):
    """3x3 'same' conv (+ optional fused input BN+ReLU) + channel stats."""
    N, Cin, HW = x_flat.shape
    Cout = w_taps.shape[1]
    Mg = _round_up(W + 1, 128)            # zero margin width, lane-aligned
    apply_bn = scale is not None

    in_specs = [
        pl.BlockSpec((1, Cin, HW), lambda n: (n, 0, 0)),
        pl.BlockSpec((9, Cout, Cin), lambda n: (0, 0, 0)),
        pl.BlockSpec((2, HW), lambda n: (0, 0)),
    ]
    operands = [x_flat, w_taps, col_masks]
    if apply_bn:
        in_specs += [pl.BlockSpec((Cin, 1), lambda n: (0, 0)),
                     pl.BlockSpec((Cin, 1), lambda n: (0, 0))]
        operands += [scale.reshape(Cin, 1), shift.reshape(Cin, 1)]

    kernel = _make_conv_kernel(H, W, Cin, Cout, Mg, apply_bn)
    y, stats = pl.pallas_call(
        kernel,
        out_shape=(jax.ShapeDtypeStruct((N, Cout, HW), ACT_DTYPE),
                   jax.ShapeDtypeStruct((N, Cout, 2), jnp.float32)),
        grid_spec=pltpu.PrefetchScalarGridSpec(
            num_scalar_prefetch=0,
            grid=(N,),
            in_specs=in_specs,
            out_specs=(pl.BlockSpec((1, Cout, HW), lambda n: (n, 0, 0)),
                       pl.BlockSpec((1, Cout, 2), lambda n: (n, 0, 0))),
            scratch_shapes=[pltpu.VMEM((Cin, HW + 2 * Mg), MXU_DTYPE)],
        ),
        compiler_params=pltpu.CompilerParams(
            dimension_semantics=("parallel",),   # per-image stats -> no races
            vmem_limit_bytes=_VMEM_LIMIT),
    )(*operands)
    return y, stats


# ----------------------------------------------------------------------------
# Kernel 3: final BatchNorm affine + ReLU, lane-dense tiled (Cout, T) store.
# ----------------------------------------------------------------------------
def bn_relu_kernel(y_ref, scale_ref, shift_ref, o_ref):
    y = y_ref[0].astype(jnp.float32)                            # (Cout, T)
    o_ref[0] = jnp.maximum(y * scale_ref[...] + shift_ref[...],
                           0.0).astype(o_ref.dtype)


def _hw_tile(HW, max_tile=8192):
    if HW <= max_tile:
        return HW
    for t in range(max_tile, 127, -128):
        if HW % t == 0:
            return t
    return HW


def bn_relu(y, scale, shift, out_dtype=jnp.float32):
    # TODO(synk): in a full network, fold this into the op consuming the
    # DoubleConv output (pool / next conv) the way BN1+ReLU is folded into
    # conv2's input path; standalone it is purely HBM-bound.
    N, Cout, HW = y.shape
    T = _hw_tile(HW)
    return pl.pallas_call(
        bn_relu_kernel,
        out_shape=jax.ShapeDtypeStruct((N, Cout, HW), out_dtype),
        grid_spec=pltpu.PrefetchScalarGridSpec(
            num_scalar_prefetch=0,
            grid=(N, HW // T),
            in_specs=[pl.BlockSpec((1, Cout, T), lambda n, t: (n, 0, t)),
                      pl.BlockSpec((Cout, 1), lambda n, t: (0, 0)),
                      pl.BlockSpec((Cout, 1), lambda n, t: (0, 0))],
            out_specs=pl.BlockSpec((1, Cout, T), lambda n, t: (n, 0, t)),
        ),
        compiler_params=pltpu.CompilerParams(
            dimension_semantics=("parallel", "parallel"),
            vmem_limit_bytes=_VMEM_LIMIT),
    )(y, scale.reshape(Cout, 1), shift.reshape(Cout, 1))


# ----------------------------------------------------------------------------
# Host-side glue (tiny O(C) math only).
# ----------------------------------------------------------------------------
def _conv_weight_taps(w_oihw):
    # OIHW (Cout, Cin, 3, 3) -> (9, Cout, Cin) with t = kh*3 + kw, cast for MXU.
    cout, cin = w_oihw.shape[0], w_oihw.shape[1]
    return (jnp.transpose(w_oihw, (2, 3, 0, 1))
            .reshape(9, cout, cin).astype(MXU_DTYPE))


def _finalize_bn(stats, gamma, beta, count, eps=1e-5):
    # Training-mode (biased) batch statistics -- matches PyTorch normalization.
    s = jnp.sum(stats[:, :, 0], axis=0)
    sq = jnp.sum(stats[:, :, 1], axis=0)
    mean = s / count
    # Clamp: E[x^2] - mean^2 can go slightly negative in f32.
    var = jnp.maximum(sq / count - mean * mean, 0.0)
    # TODO(synk): switch to a chunked / Welford reduction inside the conv
    # kernel if activation magnitudes grow enough for cancellation to matter.
    inv_std = jax.lax.rsqrt(var + eps)
    scale = (gamma * inv_std).astype(jnp.float32)
    shift = (beta - mean * scale).astype(jnp.float32)
    return scale, shift


def double_conv(x_nchw, params, eps=1e-5):
    N, cin, H, W = x_nchw.shape
    HW = H * W
    count = N * HW

    w1 = _conv_weight_taps(params["w1"])
    w2 = _conv_weight_taps(params["w2"])
    c2 = w2.shape[1]

    # Column-boundary masks for the shifted-slab conv (kill row wrap-around).
    col = jnp.tile(jnp.arange(W, dtype=jnp.int32), (H,))        # (HW,)
    col_masks = jnp.stack([(col >= 1).astype(jnp.float32),
                           (col <= W - 2).astype(jnp.float32)])  # (2, HW)

    x_flat = x_nchw.reshape(N, cin, HW)       # free: identical memory layout

    # Layer 1: conv + BN1 stats (single HBM pass over the activation).
    y1, st1 = conv3x3_stats(x_flat, w1, col_masks, H, W)
    scale1, shift1 = _finalize_bn(st1, params["gamma1"], params["beta1"],
                                  count, eps)

    # Layer 2: BN1+ReLU fused into the conv input path, then conv + BN2 stats.
    y2, st2 = conv3x3_stats(y1, w2, col_masks, H, W, scale1, shift1)
    scale2, shift2 = _finalize_bn(st2, params["gamma2"], params["beta2"],
                                  count, eps)

    # Final BN2 + ReLU (standalone, lane-dense tiled store).
    out = bn_relu(y2, scale2, shift2, out_dtype=jnp.float32)
    return out.reshape(N, c2, H, W)


# ----------------------------------------------------------------------------
# Pure-JAX reference (same semantics as the PyTorch module in training mode).
# ----------------------------------------------------------------------------
def ref_double_conv(x, params, eps=1e-5):
    def conv(x, w):
        return jax.lax.conv_general_dilated(
            x, w, window_strides=(1, 1), padding=((1, 1), (1, 1)),
            dimension_numbers=("NCHW", "OIHW", "NCHW"))

    def bn_relu_ref(y, g, b):
        mean = jnp.mean(y, axis=(0, 2, 3), keepdims=True)
        var = jnp.mean((y - mean) ** 2, axis=(0, 2, 3), keepdims=True)
        yn = (y - mean) / jnp.sqrt(var + eps)
        yn = yn * g.reshape(1, -1, 1, 1) + b.reshape(1, -1, 1, 1)
        return jnp.maximum(yn, 0.0)

    y = bn_relu_ref(conv(x, params["w1"]), params["gamma1"], params["beta1"])
    y = bn_relu_ref(conv(y, params["w2"]), params["gamma2"], params["beta2"])
    return y


if __name__ == "__main__":
    N, Cin, Cout, H, W = 2, 4, 8, 16, 16

    key = jax.random.PRNGKey(0)
    k1, k2, kx = jax.random.split(key, 3)
    w_std1 = (2.0 / (Cin * 9)) ** 0.5
    w_std2 = (2.0 / (Cout * 9)) ** 0.5
    params = {
        "w1": jax.random.normal(k1, (Cout, Cin, 3, 3), jnp.float32) * w_std1,
        "gamma1": jnp.ones((Cout,), jnp.float32),   # PyTorch BN default init
        "beta1": jnp.zeros((Cout,), jnp.float32),
        "w2": jax.random.normal(k2, (Cout, Cout, 3, 3), jnp.float32) * w_std2,
        "gamma2": jnp.ones((Cout,), jnp.float32),
        "beta2": jnp.zeros((Cout,), jnp.float32),
    }
    x = jax.random.normal(kx, (N, Cin, H, W), jnp.float32)

    out = jax.jit(double_conv)(x, params)
    out = jax.block_until_ready(out)

    ref = ref_double_conv(x, params)
    assert out.shape == (N, Cout, H, W), out.shape
    # bf16 intermediate activations / MXU operands (f32 accumulation + BN
    # math): validate against the pure-f32 reference with a looser tolerance.
    max_err = float(jnp.max(jnp.abs(out - ref)))
    assert jnp.allclose(out, ref, atol=1e-1, rtol=1e-1), max_err

    print("KERNEL_OK")
</pallas_src>

<mosaic_0001>
module attributes {stable_mosaic.version = 11 : i64} {
  func.func @conv_body_no_bn(%arg0: i32, %arg1: memref<1x4x256xf32, #tpu.memory_space<vmem>>, %arg2: memref<9x8x4xbf16, #tpu.memory_space<vmem>>, %arg3: memref<2x256xf32, #tpu.memory_space<vmem>>, %arg4: memref<1x8x256xbf16, #tpu.memory_space<vmem>>, %arg5: memref<1x8x2xf32, #tpu.memory_space<vmem>>, %arg6: memref<4x512xbf16, #tpu.memory_space<vmem>>) attributes {dimension_semantics = [#tpu.dimension_semantics<parallel>], iteration_bounds = array<i64: 2>, scalar_prefetch = 0 : i64, scratch_operands = 1 : i64, tpu.core_type = #tpu.core_type<tc>, window_params = [{transform_indices = @transform_0, window_bounds = array<i64: 1, 4, 256>}, {pipeline_mode = #tpu.pipeline_mode<synchronous>, transform_indices = @transform_1, window_bounds = array<i64: 9, 8, 4>}, {pipeline_mode = #tpu.pipeline_mode<synchronous>, transform_indices = @transform_2, window_bounds = array<i64: 2, 256>}, {transform_indices = @transform_3, window_bounds = array<i64: 1, 8, 256>}, {transform_indices = @transform_4, window_bounds = array<i64: 1, 8, 2>}]} {
    %c0 = arith.constant 0 : index
    %c0_0 = arith.constant 0 : index
    %c0_1 = arith.constant 0 : index
    %0 = vector.load %arg1[%c0, %c0_0, %c0_1] : memref<1x4x256xf32, #tpu.memory_space<vmem>>, vector<1x4x256xf32>
    %1 = vector.shape_cast %0 : vector<1x4x256xf32> to vector<4x256xf32>
    %cst = arith.constant 0.000000e+00 : bf16
    %2 = vector.broadcast %cst : bf16 to vector<4x128xbf16>
    %c0_2 = arith.constant 0 : index
    %c0_3 = arith.constant 0 : index
    %3 = vector.load %arg6[%c0_2, %c0_3] : memref<4x512xbf16, #tpu.memory_space<vmem>>, vector<4x128xbf16>
    tpu.vector_store %arg6[%c0_2, %c0_3], %2 {strides = array<i32>} : memref<4x512xbf16, #tpu.memory_space<vmem>>, vector<4x128xbf16>,
    %c0_4 = arith.constant 0 : index
    %c384 = arith.constant 384 : index
    %4 = vector.load %arg6[%c0_4, %c384] : memref<4x512xbf16, #tpu.memory_space<vmem>>, vector<4x128xbf16>
    tpu.vector_store %arg6[%c0_4, %c384], %2 {strides = array<i32>} : memref<4x512xbf16, #tpu.memory_space<vmem>>, vector<4x128xbf16>,
    %5 = arith.truncf %1 : vector<4x256xf32> to vector<4x256xbf16>
    %c0_5 = arith.constant 0 : index
    %c128 = arith.constant 128 : index
    %6 = vector.load %arg6[%c0_5, %c128] : memref<4x512xbf16, #tpu.memory_space<vmem>>, vector<4x256xbf16>
    tpu.vector_store %arg6[%c0_5, %c128], %5 {strides = array<i32>} : memref<4x512xbf16, #tpu.memory_space<vmem>>, vector<4x256xbf16>,
    %cst_6 = arith.constant 0.000000e+00 : f32
    %7 = vector.broadcast %cst_6 : f32 to vector<8x256xf32>
    %cst_7 = arith.constant 0.000000e+00 : f32
    %8 = vector.broadcast %cst_7 : f32 to vector<8x256xf32>
    %c0_8 = arith.constant 0 : index
    %c111 = arith.constant 111 : index
    %9 = vector.load %arg6[%c0_8, %c111] : memref<4x512xbf16, #tpu.memory_space<vmem>>, vector<4x256xbf16>
    %c0_9 = arith.constant 0 : index
    %c0_10 = arith.constant 0 : index
    %c0_11 = arith.constant 0 : index
    %10 = vector.load %arg2[%c0_9, %c0_10, %c0_11] : memref<9x8x4xbf16, #tpu.memory_space<vmem>>, vector<1x8x4xbf16>
    %11 = vector.shape_cast %10 : vector<1x8x4xbf16> to vector<8x4xbf16>
    %cst_12 = arith.constant dense<0.000000e+00> : vector<8x256xf32>
    %12 = tpu.matmul %11, %9, %cst_12 {dimension_numbers = #tpu.dot_dimension_numbers<[1], [0], [0], [1], [0, 0, 1, 1], [], []>} : vector<8x4xbf16>, vector<4x256xbf16>, vector<8x256xf32> -> vector<8x256xf32>
    %13 = arith.addf %8, %12 : vector<8x256xf32>
    %c0_13 = arith.constant 0 : index
    %c127 = arith.constant 127 : index
    %14 = vector.load %arg6[%c0_13, %c127] : memref<4x512xbf16, #tpu.memory_space<vmem>>, vector<4x256xbf16>
    %c3 = arith.constant 3 : index
    %c0_14 = arith.constant 0 : index
    %c0_15 = arith.constant 0 : index
    %15 = vector.load %arg2[%c3, %c0_14, %c0_15] : memref<9x8x4xbf16, #tpu.memory_space<vmem>>, vector<1x8x4xbf16>
    %16 = vector.shape_cast %15 : vector<1x8x4xbf16> to vector<8x4xbf16>
    %cst_16 = arith.constant dense<0.000000e+00> : vector<8x256xf32>
    %17 = tpu.matmul %16, %14, %cst_16 {dimension_numbers = #tpu.dot_dimension_numbers<[1], [0], [0], [1], [0, 0, 1, 1], [], []>} : vector<8x4xbf16>, vector<4x256xbf16>, vector<8x256xf32> -> vector<8x256xf32>
    %18 = arith.addf %13, %17 : vector<8x256xf32>
    %c0_17 = arith.constant 0 : index
    %c143 = arith.constant 143 : index
    %19 = vector.load %arg6[%c0_17, %c143] : memref<4x512xbf16, #tpu.memory_space<vmem>>, vector<4x256xbf16>
    %c6 = arith.constant 6 : index
    %c0_18 = arith.constant 0 : index
    %c0_19 = arith.constant 0 : index
    %20 = vector.load %arg2[%c6, %c0_18, %c0_19] : memref<9x8x4xbf16, #tpu.memory_space<vmem>>, vector<1x8x4xbf16>
    %21 = vector.shape_cast %20 : vector<1x8x4xbf16> to vector<8x4xbf16>
    %cst_20 = arith.constant dense<0.000000e+00> : vector<8x256xf32>
    %22 = tpu.matmul %21, %19, %cst_20 {dimension_numbers = #tpu.dot_dimension_numbers<[1], [0], [0], [1], [0, 0, 1, 1], [], []>} : vector<8x4xbf16>, vector<4x256xbf16>, vector<8x256xf32> -> vector<8x256xf32>
    %23 = arith.addf %18, %22 : vector<8x256xf32>
    %c0_21 = arith.constant 0 : index
    %c0_22 = arith.constant 0 : index
    %24 = vector.load %arg3[%c0_21, %c0_22] : memref<2x256xf32, #tpu.memory_space<vmem>>, vector<1x256xf32>
    %25 = vector.broadcast %24 : vector<1x256xf32> to vector<8x256xf32>
    %26 = arith.mulf %23, %25 : vector<8x256xf32>
    %27 = arith.addf %7, %26 : vector<8x256xf32>
    %cst_23 = arith.constant 0.000000e+00 : f32
    %28 = vector.broadcast %cst_23 : f32 to vector<8x256xf32>
    %c0_24 = arith.constant 0 : index
    %c112 = arith.constant 112 : index
    %29 = vector.load %arg6[%c0_24, %c112] : memref<4x512xbf16, #tpu.memory_space<vmem>>, vector<4x256xbf16>
    %c1 = arith.constant 1 : index
    %c0_25 = arith.constant 0 : index
    %c0_26 = arith.constant 0 : index
    %30 = vector.load %arg2[%c1, %c0_25, %c0_26] : memref<9x8x4xbf16, #tpu.memory_space<vmem>>, vector<1x8x4xbf16>
    %31 = vector.shape_cast %30 : vector<1x8x4xbf16> to vector<8x4xbf16>
    %cst_27 = arith.constant dense<0.000000e+00> : vector<8x256xf32>
    %32 = tpu.matmul %31, %29, %cst_27 {dimension_numbers = #tpu.dot_dimension_numbers<[1], [0], [0], [1], [0, 0, 1, 1], [], []>} : vector<8x4xbf16>, vector<4x256xbf16>, vector<8x256xf32> -> vector<8x256xf32>
    %33 = arith.addf %28, %32 : vector<8x256xf32>
    %c0_28 = arith.constant 0 : index
    %c128_29 = arith.constant 128 : index
    %34 = vector.load %arg6[%c0_28, %c128_29] : memref<4x512xbf16, #tpu.memory_space<vmem>>, vector<4x256xbf16>
    %c4 = arith.constant 4 : index
    %c0_30 = arith.constant 0 : index
    %c0_31 = arith.constant 0 : index
    %35 = vector.load %arg2[%c4, %c0_30, %c0_31] : memref<9x8x4xbf16, #tpu.memory_space<vmem>>, vector<1x8x4xbf16>
    %36 = vector.shape_cast %35 : vector<1x8x4xbf16> to vector<8x4xbf16>
    %cst_32 = arith.constant dense<0.000000e+00> : vector<8x256xf32>
    %37 = tpu.matmul %36, %34, %cst_32 {dimension_numbers = #tpu.dot_dimension_numbers<[1], [0], [0], [1], [0, 0, 1, 1], [], []>} : vector<8x4xbf16>, vector<4x256xbf16>, vector<8x256xf32> -> vector<8x256xf32>
    %38 = arith.addf %33, %37 : vector<8x256xf32>
    %c0_33 = arith.constant 0 : index
    %c144 = arith.constant 144 : index
    %39 = vector.load %arg6[%c0_33, %c144] : memref<4x512xbf16, #tpu.memory_space<vmem>>, vector<4x256xbf16>
    %c7 = arith.constant 7 : index
    %c0_34 = arith.constant 0 : index
    %c0_35 = arith.constant 0 : index
    %40 = vector.load %arg2[%c7, %c0_34, %c0_35] : memref<9x8x4xbf16, #tpu.memory_space<vmem>>, vector<1x8x4xbf16>
    %41 = vector.shape_cast %40 : vector<1x8x4xbf16> to vector<8x4xbf16>
    %cst_36 = arith.constant dense<0.000000e+00> : vector<8x256xf32>
    %42 = tpu.matmul %41, %39, %cst_36 {dimension_numbers = #tpu.dot_dimension_numbers<[1], [0], [0], [1], [0, 0, 1, 1], [], []>} : vector<8x4xbf16>, vector<4x256xbf16>, vector<8x256xf32> -> vector<8x256xf32>
    %43 = arith.addf %38, %42 : vector<8x256xf32>
    %44 = arith.addf %27, %43 : vector<8x256xf32>
    %cst_37 = arith.constant 0.000000e+00 : f32
    %45 = vector.broadcast %cst_37 : f32 to vector<8x256xf32>
    %c0_38 = arith.constant 0 : index
    %c113 = arith.constant 113 : index
    %46 = vector.load %arg6[%c0_38, %c113] : memref<4x512xbf16, #tpu.memory_space<vmem>>, vector<4x256xbf16>
    %c2 = arith.constant 2 : index
    %c0_39 = arith.constant 0 : index
    %c0_40 = arith.constant 0 : index
    %47 = vector.load %arg2[%c2, %c0_39, %c0_40] : memref<9x8x4xbf16, #tpu.memory_space<vmem>>, vector<1x8x4xbf16>
    %48 = vector.shape_cast %47 : vector<1x8x4xbf16> to vector<8x4xbf16>
    %cst_41 = arith.constant dense<0.000000e+00> : vector<8x256xf32>
    %49 = tpu.matmul %48, %46, %cst_41 {dimension_numbers = #tpu.dot_dimension_numbers<[1], [0], [0], [1], [0, 0, 1, 1], [], []>} : vector<8x4xbf16>, vector<4x256xbf16>, vector<8x256xf32> -> vector<8x256xf32>
    %50 = arith.addf %45, %49 : vector<8x256xf32>
    %c0_42 = arith.constant 0 : index
    %c129 = arith.constant 129 : index
    %51 = vector.load %arg6[%c0_42, %c129] : memref<4x512xbf16, #tpu.memory_space<vmem>>, vector<4x256xbf16>
    %c5 = arith.constant 5 : index
    %c0_43 = arith.constant 0 : index
    %c0_44 = arith.constant 0 : index
    %52 = vector.load %arg2[%c5, %c0_43, %c0_44] : memref<9x8x4xbf16, #tpu.memory_space<vmem>>, vector<1x8x4xbf16>
    %53 = vector.shape_cast %52 : vector<1x8x4xbf16> to vector<8x4xbf16>
    %cst_45 = arith.constant dense<0.000000e+00> : vector<8x256xf32>
    %54 = tpu.matmul %53, %51, %cst_45 {dimension_numbers = #tpu.dot_dimension_numbers<[1], [0], [0], [1], [0, 0, 1, 1], [], []>} : vector<8x4xbf16>, vector<4x256xbf16>, vector<8x256xf32> -> vector<8x256xf32>
    %55 = arith.addf %50, %54 : vector<8x256xf32>
    %c0_46 = arith.constant 0 : index
    %c145 = arith.constant 145 : index
    %56 = vector.load %arg6[%c0_46, %c145] : memref<4x512xbf16, #tpu.memory_space<vmem>>, vector<4x256xbf16>
    %c8 = arith.constant 8 : index
    %c0_47 = arith.constant 0 : index
    %c0_48 = arith.constant 0 : index
    %57 = vector.load %arg2[%c8, %c0_47, %c0_48] : memref<9x8x4xbf16, #tpu.memory_space<vmem>>, vector<1x8x4xbf16>
    %58 = vector.shape_cast %57 : vector<1x8x4xbf16> to vector<8x4xbf16>
    %cst_49 = arith.constant dense<0.000000e+00> : vector<8x256xf32>
    %59 = tpu.matmul %58, %56, %cst_49 {dimension_numbers = #tpu.dot_dimension_numbers<[1], [0], [0], [1], [0, 0, 1, 1], [], []>} : vector<8x4xbf16>, vector<4x256xbf16>, vector<8x256xf32> -> vector<8x256xf32>
    %60 = arith.addf %55, %59 : vector<8x256xf32>
    %c1_50 = arith.constant 1 : index
    %c0_51 = arith.constant 0 : index
    %61 = vector.load %arg3[%c1_50, %c0_51] : memref<2x256xf32, #tpu.memory_space<vmem>>, vector<1x256xf32>
    %62 = vector.broadcast %61 : vector<1x256xf32> to vector<8x256xf32>
    %63 = arith.mulf %60, %62 : vector<8x256xf32>
    %64 = arith.addf %44, %63 : vector<8x256xf32>
    %65 = arith.truncf %64 : vector<8x256xf32> to vector<8x256xbf16>
    %c0_52 = arith.constant 0 : index
    %c0_53 = arith.constant 0 : index
    %c0_54 = arith.constant 0 : index
    %66 = vector.load %arg4[%c0_52, %c0_53, %c0_54] : memref<1x8x256xbf16, #tpu.memory_space<vmem>>, vector<1x8x256xbf16>
    %67 = vector.shape_cast %66 : vector<1x8x256xbf16> to vector<8x256xbf16>
    %68 = vector.shape_cast %65 : vector<8x256xbf16> to vector<1x8x256xbf16>
    tpu.vector_store %arg4[%c0_52, %c0_53, %c0_54], %68 {strides = array<i32>} : memref<1x8x256xbf16, #tpu.memory_space<vmem>>, vector<1x8x256xbf16>,
    %cst_55 = arith.constant dense<0.000000e+00> : vector<8xf32>
    %69 = vector.multi_reduction <add>, %64, %cst_55 [1] : vector<8x256xf32> to vector<8xf32>
    %70 = vector.shape_cast %69 : vector<8xf32> to vector<8x1xf32>
    %c0_56 = arith.constant 0 : index
    %c0_57 = arith.constant 0 : index
    %c0_58 = arith.constant 0 : index
    %71 = vector.load %arg5[%c0_56, %c0_57, %c0_58] : memref<1x8x2xf32, #tpu.memory_space<vmem>>, vector<1x8x1xf32>
    %72 = vector.shape_cast %71 : vector<1x8x1xf32> to vector<8x1xf32>
    %73 = vector.shape_cast %70 : vector<8x1xf32> to vector<1x8x1xf32>
    tpu.vector_store %arg5[%c0_56, %c0_57, %c0_58], %73 {strides = array<i32>} : memref<1x8x2xf32, #tpu.memory_space<vmem>>, vector<1x8x1xf32>,
    %74 = arith.mulf %64, %64 : vector<8x256xf32>
    %cst_59 = arith.constant dense<0.000000e+00> : vector<8xf32>
    %75 = vector.multi_reduction <add>, %74, %cst_59 [1] : vector<8x256xf32> to vector<8xf32>
    %76 = vector.shape_cast %75 : vector<8xf32> to vector<8x1xf32>
    %c0_60 = arith.constant 0 : index
    %c0_61 = arith.constant 0 : index
    %c1_62 = arith.constant 1 : index
    %77 = vector.load %arg5[%c0_60, %c0_61, %c1_62] : memref<1x8x2xf32, #tpu.memory_space<vmem>>, vector<1x8x1xf32>
    %78 = vector.shape_cast %77 : vector<1x8x1xf32> to vector<8x1xf32>
    %79 = vector.shape_cast %76 : vector<8x1xf32> to vector<1x8x1xf32>
    tpu.vector_store %arg5[%c0_60, %c0_61, %c1_62], %79 {strides = array<i32>} : memref<1x8x2xf32, #tpu.memory_space<vmem>>, vector<1x8x1xf32>,
    return
  }
  func.func @transform_0(%arg0: i32) -> (i32, i32, i32) {
    %c0_i32 = arith.constant 0 : i32
    %c0_i32_0 = arith.constant 0 : i32
    %c0_i32_1 = arith.constant 0 : i32
    return %arg0, %c0_i32, %c0_i32_0 : i32, i32, i32
  }
  func.func @transform_1(%arg0: i32) -> (i32, i32, i32) {
    %c0_i32 = arith.constant 0 : i32
    %c0_i32_0 = arith.constant 0 : i32
    %c0_i32_1 = arith.constant 0 : i32
    %c0_i32_2 = arith.constant 0 : i32
    return %c0_i32, %c0_i32_0, %c0_i32_1 : i32, i32, i32
  }
  func.func @transform_2(%arg0: i32) -> (i32, i32) {
    %c0_i32 = arith.constant 0 : i32
    %c0_i32_0 = arith.constant 0 : i32
    %c0_i32_1 = arith.constant 0 : i32
    return %c0_i32, %c0_i32_0 : i32, i32
  }
  func.func @transform_3(%arg0: i32) -> (i32, i32, i32) {
    %c0_i32 = arith.constant 0 : i32
    %c0_i32_0 = arith.constant 0 : i32
    %c0_i32_1 = arith.constant 0 : i32
    return %arg0, %c0_i32, %c0_i32_0 : i32, i32, i32
  }
  func.func @transform_4(%arg0: i32) -> (i32, i32, i32) {
    %c0_i32 = arith.constant 0 : i32
    %c0_i32_0 = arith.constant 0 : i32
    %c0_i32_1 = arith.constant 0 : i32
    return %arg0, %c0_i32, %c0_i32_0 : i32, i32, i32
  }
}

module attributes {stable_mosaic.version = 11 : i64} {
  func.func @conv_body(%arg0: i32, %arg1: memref<1x8x256xbf16, #tpu.memory_space<vmem>>, %arg2: memref<9x8x8xbf16, #tpu.memory_space<vmem>>, %arg3: memref<2x256xf32, #tpu.memory_space<vmem>>, %arg4: memref<8x1xf32, #tpu.memory_space<vmem>>, %arg5: memref<8x1xf32, #tpu.memory_space<vmem>>, %arg6: memref<1x8x256xbf16, #tpu.memory_space<vmem>>, %arg7: memref<1x8x2xf32, #tpu.memory_space<vmem>>, %arg8: memref<8x512xbf16, #tpu.memory_space<vmem>>) attributes {dimension_semantics = [#tpu.dimension_semantics<parallel>], iteration_bounds = array<i64: 2>, scalar_prefetch = 0 : i64, scratch_operands = 1 : i64, tpu.core_type = #tpu.core_type<tc>, window_params = [{transform_indices = @transform_0, window_bounds = array<i64: 1, 8, 256>}, {pipeline_mode = #tpu.pipeline_mode<synchronous>, transform_indices = @transform_1, window_bounds = array<i64: 9, 8, 8>}, {pipeline_mode = #tpu.pipeline_mode<synchronous>, transform_indices = @transform_2, window_bounds = array<i64: 2, 256>}, {pipeline_mode = #tpu.pipeline_mode<synchronous>, transform_indices = @transform_3, window_bounds = array<i64: 8, 1>}, {pipeline_mode = #tpu.pipeline_mode<synchronous>, transform_indices = @transform_4, window_bounds = array<i64: 8, 1>}, {transform_indices = @transform_5, window_bounds = array<i64: 1, 8, 256>}, {transform_indices = @transform_6, window_bounds = array<i64: 1, 8, 2>}]} {
    %c0 = arith.constant 0 : index
    %c0_0 = arith.constant 0 : index
    %c0_1 = arith.constant 0 : index
    %0 = vector.load %arg1[%c0, %c0_0, %c0_1] : memref<1x8x256xbf16, #tpu.memory_space<vmem>>, vector<1x8x256xbf16>
    %1 = vector.shape_cast %0 : vector<1x8x256xbf16> to vector<8x256xbf16>
    %2 = arith.extf %1 : vector<8x256xbf16> to vector<8x256xf32>
    %c0_2 = arith.constant 0 : index
    %c0_3 = arith.constant 0 : index
    %3 = vector.load %arg4[%c0_2, %c0_3] : memref<8x1xf32, #tpu.memory_space<vmem>>, vector<8x1xf32>
    %4 = vector.broadcast %3 : vector<8x1xf32> to vector<8x256xf32>
    %5 = arith.mulf %2, %4 : vector<8x256xf32>
    %c0_4 = arith.constant 0 : index
    %c0_5 = arith.constant 0 : index
    %6 = vector.load %arg5[%c0_4, %c0_5] : memref<8x1xf32, #tpu.memory_space<vmem>>, vector<8x1xf32>
    %7 = vector.broadcast %6 : vector<8x1xf32> to vector<8x256xf32>
    %8 = arith.addf %5, %7 : vector<8x256xf32>
    %cst = arith.constant 0.000000e+00 : f32
    %9 = vector.broadcast %cst : f32 to vector<8x256xf32>
    %10 = arith.maximumf %8, %9 : vector<8x256xf32>
    %cst_6 = arith.constant 0.000000e+00 : bf16
    %11 = vector.broadcast %cst_6 : bf16 to vector<8x128xbf16>
    %c0_7 = arith.constant 0 : index
    %c0_8 = arith.constant 0 : index
    %12 = vector.load %arg8[%c0_7, %c0_8] : memref<8x512xbf16, #tpu.memory_space<vmem>>, vector<8x128xbf16>
    tpu.vector_store %arg8[%c0_7, %c0_8], %11 {strides = array<i32>} : memref<8x512xbf16, #tpu.memory_space<vmem>>, vector<8x128xbf16>,
    %c0_9 = arith.constant 0 : index
    %c384 = arith.constant 384 : index
    %13 = vector.load %arg8[%c0_9, %c384] : memref<8x512xbf16, #tpu.memory_space<vmem>>, vector<8x128xbf16>
    tpu.vector_store %arg8[%c0_9, %c384], %11 {strides = array<i32>} : memref<8x512xbf16, #tpu.memory_space<vmem>>, vector<8x128xbf16>,
    %14 = arith.truncf %10 : vector<8x256xf32> to vector<8x256xbf16>
    %c0_10 = arith.constant 0 : index
    %c128 = arith.constant 128 : index
    %15 = vector.load %arg8[%c0_10, %c128] : memref<8x512xbf16, #tpu.memory_space<vmem>>, vector<8x256xbf16>
    tpu.vector_store %arg8[%c0_10, %c128], %14 {strides = array<i32>} : memref<8x512xbf16, #tpu.memory_space<vmem>>, vector<8x256xbf16>,
    %cst_11 = arith.constant 0.000000e+00 : f32
    %16 = vector.broadcast %cst_11 : f32 to vector<8x256xf32>
    %cst_12 = arith.constant 0.000000e+00 : f32
    %17 = vector.broadcast %cst_12 : f32 to vector<8x256xf32>
    %c0_13 = arith.constant 0 : index
    %c111 = arith.constant 111 : index
    %18 = vector.load %arg8[%c0_13, %c111] : memref<8x512xbf16, #tpu.memory_space<vmem>>, vector<8x256xbf16>
    %c0_14 = arith.constant 0 : index
    %c0_15 = arith.constant 0 : index
    %c0_16 = arith.constant 0 : index
    %19 = vector.load %arg2[%c0_14, %c0_15, %c0_16] : memref<9x8x8xbf16, #tpu.memory_space<vmem>>, vector<1x8x8xbf16>
    %20 = vector.shape_cast %19 : vector<1x8x8xbf16> to vector<8x8xbf16>
    %cst_17 = arith.constant dense<0.000000e+00> : vector<8x256xf32>
    %21 = tpu.matmul %20, %18, %cst_17 {dimension_numbers = #tpu.dot_dimension_numbers<[1], [0], [0], [1], [0, 0, 1, 1], [], []>} : vector<8x8xbf16>, vector<8x256xbf16>, vector<8x256xf32> -> vector<8x256xf32>
    %22 = arith.addf %17, %21 : vector<8x256xf32>
    %c0_18 = arith.constant 0 : index
    %c127 = arith.constant 127 : index
    %23 = vector.load %arg8[%c0_18, %c127] : memref<8x512xbf16, #tpu.memory_space<vmem>>, vector<8x256xbf16>
    %c3 = arith.constant 3 : index
    %c0_19 = arith.constant 0 : index
    %c0_20 = arith.constant 0 : index
    %24 = vector.load %arg2[%c3, %c0_19, %c0_20] : memref<9x8x8xbf16, #tpu.memory_space<vmem>>, vector<1x8x8xbf16>
    %25 = vector.shape_cast %24 : vector<1x8x8xbf16> to vector<8x8xbf16>
    %cst_21 = arith.constant dense<0.000000e+00> : vector<8x256xf32>
    %26 = tpu.matmul %25, %23, %cst_21 {dimension_numbers = #tpu.dot_dimension_numbers<[1], [0], [0], [1], [0, 0, 1, 1], [], []>} : vector<8x8xbf16>, vector<8x256xbf16>, vector<8x256xf32> -> vector<8x256xf32>
    %27 = arith.addf %22, %26 : vector<8x256xf32>
    %c0_22 = arith.constant 0 : index
    %c143 = arith.constant 143 : index
    %28 = vector.load %arg8[%c0_22, %c143] : memref<8x512xbf16, #tpu.memory_space<vmem>>, vector<8x256xbf16>
    %c6 = arith.constant 6 : index
    %c0_23 = arith.constant 0 : index
    %c0_24 = arith.constant 0 : index
    %29 = vector.load %arg2[%c6, %c0_23, %c0_24] : memref<9x8x8xbf16, #tpu.memory_space<vmem>>, vector<1x8x8xbf16>
    %30 = vector.shape_cast %29 : vector<1x8x8xbf16> to vector<8x8xbf16>
    %cst_25 = arith.constant dense<0.000000e+00> : vector<8x256xf32>
    %31 = tpu.matmul %30, %28, %cst_25 {dimension_numbers = #tpu.dot_dimension_numbers<[1], [0], [0], [1], [0, 0, 1, 1], [], []>} : vector<8x8xbf16>, vector<8x256xbf16>, vector<8x256xf32> -> vector<8x256xf32>
    %32 = arith.addf %27, %31 : vector<8x256xf32>
    %c0_26 = arith.constant 0 : index
    %c0_27 = arith.constant 0 : index
    %33 = vector.load %arg3[%c0_26, %c0_27] : memref<2x256xf32, #tpu.memory_space<vmem>>, vector<1x256xf32>
    %34 = vector.broadcast %33 : vector<1x256xf32> to vector<8x256xf32>
    %35 = arith.mulf %32, %34 : vector<8x256xf32>
    %36 = arith.addf %16, %35 : vector<8x256xf32>
    %cst_28 = arith.constant 0.000000e+00 : f32
    %37 = vector.broadcast %cst_28 : f32 to vector<8x256xf32>
    %c0_29 = arith.constant 0 : index
    %c112 = arith.constant 112 : index
    %38 = vector.load %arg8[%c0_29, %c112] : memref<8x512xbf16, #tpu.memory_space<vmem>>, vector<8x256xbf16>
    %c1 = arith.constant 1 : index
    %c0_30 = arith.constant 0 : index
    %c0_31 = arith.constant 0 : index
    %39 = vector.load %arg2[%c1, %c0_30, %c0_31] : memref<9x8x8xbf16, #tpu.memory_space<vmem>>, vector<1x8x8xbf16>
    %40 = vector.shape_cast %39 : vector<1x8x8xbf16> to vector<8x8xbf16>
    %cst_32 = arith.constant dense<0.000000e+00> : vector<8x256xf32>
    %41 = tpu.matmul %40, %38, %cst_32 {dimension_numbers = #tpu.dot_dimension_numbers<[1], [0], [0], [1], [0, 0, 1, 1], [], []>} : vector<8x8xbf16>, vector<8x256xbf16>, vector<8x256xf32> -> vector<8x256xf32>
    %42 = arith.addf %37, %41 : vector<8x256xf32>
    %c0_33 = arith.constant 0 : index
    %c128_34 = arith.constant 128 : index
    %43 = vector.load %arg8[%c0_33, %c128_34] : memref<8x512xbf16, #tpu.memory_space<vmem>>, vector<8x256xbf16>
    %c4 = arith.constant 4 : index
    %c0_35 = arith.constant 0 : index
    %c0_36 = arith.constant 0 : index
    %44 = vector.load %arg2[%c4, %c0_35, %c0_36] : memref<9x8x8xbf16, #tpu.memory_space<vmem>>, vector<1x8x8xbf16>
    %45 = vector.shape_cast %44 : vector<1x8x8xbf16> to vector<8x8xbf16>
    %cst_37 = arith.constant dense<0.000000e+00> : vector<8x256xf32>
    %46 = tpu.matmul %45, %43, %cst_37 {dimension_numbers = #tpu.dot_dimension_numbers<[1], [0], [0], [1], [0, 0, 1, 1], [], []>} : vector<8x8xbf16>, vector<8x256xbf16>, vector<8x256xf32> -> vector<8x256xf32>
    %47 = arith.addf %42, %46 : vector<8x256xf32>
    %c0_38 = arith.constant 0 : index
    %c144 = arith.constant 144 : index
    %48 = vector.load %arg8[%c0_38, %c144] : memref<8x512xbf16, #tpu.memory_space<vmem>>, vector<8x256xbf16>
    %c7 = arith.constant 7 : index
    %c0_39 = arith.constant 0 : index
    %c0_40 = arith.constant 0 : index
    %49 = vector.load %arg2[%c7, %c0_39, %c0_40] : memref<9x8x8xbf16, #tpu.memory_space<vmem>>, vector<1x8x8xbf16>
    %50 = vector.shape_cast %49 : vector<1x8x8xbf16> to vector<8x8xbf16>
    %cst_41 = arith.constant dense<0.000000e+00> : vector<8x256xf32>
    %51 = tpu.matmul %50, %48, %cst_41 {dimension_numbers = #tpu.dot_dimension_numbers<[1], [0], [0], [1], [0, 0, 1, 1], [], []>} : vector<8x8xbf16>, vector<8x256xbf16>, vector<8x256xf32> -> vector<8x256xf32>
    %52 = arith.addf %47, %51 : vector<8x256xf32>
    %53 = arith.addf %36, %52 : vector<8x256xf32>
    %cst_42 = arith.constant 0.000000e+00 : f32
    %54 = vector.broadcast %cst_42 : f32 to vector<8x256xf32>
    %c0_43 = arith.constant 0 : index
    %c113 = arith.constant 113 : index
    %55 = vector.load %arg8[%c0_43, %c113] : memref<8x512xbf16, #tpu.memory_space<vmem>>, vector<8x256xbf16>
    %c2 = arith.constant 2 : index
    %c0_44 = arith.constant 0 : index
    %c0_45 = arith.constant 0 : index
    %56 = vector.load %arg2[%c2, %c0_44, %c0_45] : memref<9x8x8xbf16, #tpu.memory_space<vmem>>, vector<1x8x8xbf16>
    %57 = vector.shape_cast %56 : vector<1x8x8xbf16> to vector<8x8xbf16>
    %cst_46 = arith.constant dense<0.000000e+00> : vector<8x256xf32>
    %58 = tpu.matmul %57, %55, %cst_46 {dimension_numbers = #tpu.dot_dimension_numbers<[1], [0], [0], [1], [0, 0, 1, 1], [], []>} : vector<8x8xbf16>, vector<8x256xbf16>, vector<8x256xf32> -> vector<8x256xf32>
    %59 = arith.addf %54, %58 : vector<8x256xf32>
    %c0_47 = arith.constant 0 : index
    %c129 = arith.constant 129 : index
    %60 = vector.load %arg8[%c0_47, %c129] : memref<8x512xbf16, #tpu.memory_space<vmem>>, vector<8x256xbf16>
    %c5 = arith.constant 5 : index
    %c0_48 = arith.constant 0 : index
    %c0_49 = arith.constant 0 : index
    %61 = vector.load %arg2[%c5, %c0_48, %c0_49] : memref<9x8x8xbf16, #tpu.memory_space<vmem>>, vector<1x8x8xbf16>
    %62 = vector.shape_cast %61 : vector<1x8x8xbf16> to vector<8x8xbf16>
    %cst_50 = arith.constant dense<0.000000e+00> : vector<8x256xf32>
    %63 = tpu.matmul %62, %60, %cst_50 {dimension_numbers = #tpu.dot_dimension_numbers<[1], [0], [0], [1], [0, 0, 1, 1], [], []>} : vector<8x8xbf16>, vector<8x256xbf16>, vector<8x256xf32> -> vector<8x256xf32>
    %64 = arith.addf %59, %63 : vector<8x256xf32>
    %c0_51 = arith.constant 0 : index
    %c145 = arith.constant 145 : index
    %65 = vector.load %arg8[%c0_51, %c145] : memref<8x512xbf16, #tpu.memory_space<vmem>>, vector<8x256xbf16>
    %c8 = arith.constant 8 : index
    %c0_52 = arith.constant 0 : index
    %c0_53 = arith.constant 0 : index
    %66 = vector.load %arg2[%c8, %c0_52, %c0_53] : memref<9x8x8xbf16, #tpu.memory_space<vmem>>, vector<1x8x8xbf16>
    %67 = vector.shape_cast %66 : vector<1x8x8xbf16> to vector<8x8xbf16>
    %cst_54 = arith.constant dense<0.000000e+00> : vector<8x256xf32>
    %68 = tpu.matmul %67, %65, %cst_54 {dimension_numbers = #tpu.dot_dimension_numbers<[1], [0], [0], [1], [0, 0, 1, 1], [], []>} : vector<8x8xbf16>, vector<8x256xbf16>, vector<8x256xf32> -> vector<8x256xf32>
    %69 = arith.addf %64, %68 : vector<8x256xf32>
    %c1_55 = arith.constant 1 : index
    %c0_56 = arith.constant 0 : index
    %70 = vector.load %arg3[%c1_55, %c0_56] : memref<2x256xf32, #tpu.memory_space<vmem>>, vector<1x256xf32>
    %71 = vector.broadcast %70 : vector<1x256xf32> to vector<8x256xf32>
    %72 = arith.mulf %69, %71 : vector<8x256xf32>
    %73 = arith.addf %53, %72 : vector<8x256xf32>
    %74 = arith.truncf %73 : vector<8x256xf32> to vector<8x256xbf16>
    %c0_57 = arith.constant 0 : index
    %c0_58 = arith.constant 0 : index
    %c0_59 = arith.constant 0 : index
    %75 = vector.load %arg6[%c0_57, %c0_58, %c0_59] : memref<1x8x256xbf16, #tpu.memory_space<vmem>>, vector<1x8x256xbf16>
    %76 = vector.shape_cast %75 : vector<1x8x256xbf16> to vector<8x256xbf16>
    %77 = vector.shape_cast %74 : vector<8x256xbf16> to vector<1x8x256xbf16>
    tpu.vector_store %arg6[%c0_57, %c0_58, %c0_59], %77 {strides = array<i32>} : memref<1x8x256xbf16, #tpu.memory_space<vmem>>, vector<1x8x256xbf16>,
    %cst_60 = arith.constant dense<0.000000e+00> : vector<8xf32>
    %78 = vector.multi_reduction <add>, %73, %cst_60 [1] : vector<8x256xf32> to vector<8xf32>
    %79 = vector.shape_cast %78 : vector<8xf32> to vector<8x1xf32>
    %c0_61 = arith.constant 0 : index
    %c0_62 = arith.constant 0 : index
    %c0_63 = arith.constant 0 : index
    %80 = vector.load %arg7[%c0_61, %c0_62, %c0_63] : memref<1x8x2xf32, #tpu.memory_space<vmem>>, vector<1x8x1xf32>
    %81 = vector.shape_cast %80 : vector<1x8x1xf32> to vector<8x1xf32>
    %82 = vector.shape_cast %79 : vector<8x1xf32> to vector<1x8x1xf32>
    tpu.vector_store %arg7[%c0_61, %c0_62, %c0_63], %82 {strides = array<i32>} : memref<1x8x2xf32, #tpu.memory_space<vmem>>, vector<1x8x1xf32>,
    %83 = arith.mulf %73, %73 : vector<8x256xf32>
    %cst_64 = arith.constant dense<0.000000e+00> : vector<8xf32>
    %84 = vector.multi_reduction <add>, %83, %cst_64 [1] : vector<8x256xf32> to vector<8xf32>
    %85 = vector.shape_cast %84 : vector<8xf32> to vector<8x1xf32>
    %c0_65 = arith.constant 0 : index
    %c0_66 = arith.constant 0 : index
    %c1_67 = arith.constant 1 : index
    %86 = vector.load %arg7[%c0_65, %c0_66, %c1_67] : memref<1x8x2xf32, #tpu.memory_space<vmem>>, vector<1x8x1xf32>
    %87 = vector.shape_cast %86 : vector<1x8x1xf32> to vector<8x1xf32>
    %88 = vector.shape_cast %85 : vector<8x1xf32> to vector<1x8x1xf32>
    tpu.vector_store %arg7[%c0_65, %c0_66, %c1_67], %88 {strides = array<i32>} : memref<1x8x2xf32, #tpu.memory_space<vmem>>, vector<1x8x1xf32>,
    return
  }
  func.func @transform_0(%arg0: i32) -> (i32, i32, i32) {
    %c0_i32 = arith.constant 0 : i32
    %c0_i32_0 = arith.constant 0 : i32
    %c0_i32_1 = arith.constant 0 : i32
    return %arg0, %c0_i32, %c0_i32_0 : i32, i32, i32
  }
  func.func @transform_1(%arg0: i32) -> (i32, i32, i32) {
    %c0_i32 = arith.constant 0 : i32
    %c0_i32_0 = arith.constant 0 : i32
    %c0_i32_1 = arith.constant 0 : i32
    %c0_i32_2 = arith.constant 0 : i32
    return %c0_i32, %c0_i32_0, %c0_i32_1 : i32, i32, i32
  }
  func.func @transform_2(%arg0: i32) -> (i32, i32) {
    %c0_i32 = arith.constant 0 : i32
    %c0_i32_0 = arith.constant 0 : i32
    %c0_i32_1 = arith.constant 0 : i32
    return %c0_i32, %c0_i32_0 : i32, i32
  }
  func.func @transform_3(%arg0: i32) -> (i32, i32) {
    %c0_i32 = arith.constant 0 : i32
    %c0_i32_0 = arith.constant 0 : i32
    %c0_i32_1 = arith.constant 0 : i32
    return %c0_i32, %c0_i32_0 : i32, i32
  }
  func.func @transform_4(%arg0: i32) -> (i32, i32) {
    %c0_i32 = arith.constant 0 : i32
    %c0_i32_0 = arith.constant 0 : i32
    %c0_i32_1 = arith.constant 0 : i32
    return %c0_i32, %c0_i32_0 : i32, i32
  }
  func.func @transform_5(%arg0: i32) -> (i32, i32, i32) {
    %c0_i32 = arith.constant 0 : i32
    %c0_i32_0 = arith.constant 0 : i32
    %c0_i32_1 = arith.constant 0 : i32
    return %arg0, %c0_i32, %c0_i32_0 : i32, i32, i32
  }
  func.func @transform_6(%arg0: i32) -> (i32, i32, i32) {
    %c0_i32 = arith.constant 0 : i32
    %c0_i32_0 = arith.constant 0 : i32
    %c0_i32_1 = arith.constant 0 : i32
    return %arg0, %c0_i32, %c0_i32_0 : i32, i32, i32
  }
}

module attributes {stable_mosaic.version = 11 : i64} {
  func.func @bn_relu_kernel(%arg0: i32, %arg1: i32, %arg2: memref<1x8x256xbf16, #tpu.memory_space<vmem>>, %arg3: memref<8x1xf32, #tpu.memory_space<vmem>>, %arg4: memref<8x1xf32, #tpu.memory_space<vmem>>, %arg5: memref<1x8x256xf32, #tpu.memory_space<vmem>>) attributes {dimension_semantics = [#tpu.dimension_semantics<parallel>, #tpu.dimension_semantics<parallel>], iteration_bounds = array<i64: 2, 1>, scalar_prefetch = 0 : i64, scratch_operands = 0 : i64, tpu.core_type = #tpu.core_type<tc>, window_params = [{transform_indices = @transform_0, window_bounds = array<i64: 1, 8, 256>}, {pipeline_mode = #tpu.pipeline_mode<synchronous>, transform_indices = @transform_1, window_bounds = array<i64: 8, 1>}, {pipeline_mode = #tpu.pipeline_mode<synchronous>, transform_indices = @transform_2, window_bounds = array<i64: 8, 1>}, {transform_indices = @transform_3, window_bounds = array<i64: 1, 8, 256>}]} {
    %c0 = arith.constant 0 : index
    %c0_0 = arith.constant 0 : index
    %c0_1 = arith.constant 0 : index
    %0 = vector.load %arg2[%c0, %c0_0, %c0_1] : memref<1x8x256xbf16, #tpu.memory_space<vmem>>, vector<1x8x256xbf16>
    %1 = vector.shape_cast %0 : vector<1x8x256xbf16> to vector<8x256xbf16>
    %2 = arith.extf %1 : vector<8x256xbf16> to vector<8x256xf32>
    %c0_2 = arith.constant 0 : index
    %c0_3 = arith.constant 0 : index
    %3 = vector.load %arg3[%c0_2, %c0_3] : memref<8x1xf32, #tpu.memory_space<vmem>>, vector<8x1xf32>
    %4 = vector.broadcast %3 : vector<8x1xf32> to vector<8x256xf32>
    %5 = arith.mulf %2, %4 : vector<8x256xf32>
    %c0_4 = arith.constant 0 : index
    %c0_5 = arith.constant 0 : index
    %6 = vector.load %arg4[%c0_4, %c0_5] : memref<8x1xf32, #tpu.memory_space<vmem>>, vector<8x1xf32>
    %7 = vector.broadcast %6 : vector<8x1xf32> to vector<8x256xf32>
    %8 = arith.addf %5, %7 : vector<8x256xf32>
    %cst = arith.constant 0.000000e+00 : f32
    %9 = vector.broadcast %cst : f32 to vector<8x256xf32>
    %10 = arith.maximumf %8, %9 : vector<8x256xf32>
    %c0_6 = arith.constant 0 : index
    %c0_7 = arith.constant 0 : index
    %c0_8 = arith.constant 0 : index
    %11 = vector.load %arg5[%c0_6, %c0_7, %c0_8] : memref<1x8x256xf32, #tpu.memory_space<vmem>>, vector<1x8x256xf32>
    %12 = vector.shape_cast %11 : vector<1x8x256xf32> to vector<8x256xf32>
    %13 = vector.shape_cast %10 : vector<8x256xf32> to vector<1x8x256xf32>
    tpu.vector_store %arg5[%c0_6, %c0_7, %c0_8], %13 {strides = array<i32>} : memref<1x8x256xf32, #tpu.memory_space<vmem>>, vector<1x8x256xf32>,
    return
  }
  func.func @transform_0(%arg0: i32, %arg1: i32) -> (i32, i32, i32) {
    %c0_i32 = arith.constant 0 : i32
    %c0_i32_0 = arith.constant 0 : i32
    return %arg0, %c0_i32, %arg1 : i32, i32, i32
  }
  func.func @transform_1(%arg0: i32, %arg1: i32) -> (i32, i32) {
    %c0_i32 = arith.constant 0 : i32
    %c0_i32_0 = arith.constant 0 : i32
    %c0_i32_1 = arith.constant 0 : i32
    return %c0_i32, %c0_i32_0 : i32, i32
  }
  func.func @transform_2(%arg0: i32, %arg1: i32) -> (i32, i32) {
    %c0_i32 = arith.constant 0 : i32
    %c0_i32_0 = arith.constant 0 : i32
    %c0_i32_1 = arith.constant 0 : i32
    return %c0_i32, %c0_i32_0 : i32, i32
  }
  func.func @transform_3(%arg0: i32, %arg1: i32) -> (i32, i32, i32) {
    %c0_i32 = arith.constant 0 : i32
    %c0_i32_0 = arith.constant 0 : i32
    return %arg0, %c0_i32, %arg1 : i32, i32, i32
  }
}

</mosaic_0001>

<llo_original>
// kernel: double_conv.5
$region0: #{double_conv.5}
  #allocation0 [shape = 'u32[]', space=smem, size = 0x4, offset = 0x4, fixed_abs, tag = 'smem constant byte address 0x4 - core index']
  #allocation1 [shape = 'u32[144,128]{1,0:T(1,128)}', space=vmem, size = 0x12000, scoped, tag = 'internal scratch']
  %s0 = inlined_call_operand.vmem [shape: bf16[2,8,256], index: 0, kind: input, shape index: {}]
  %s1 = inlined_call_operand.vmem [shape: f32[8,1], index: 1, kind: input, shape index: {}]
  %s2 = inlined_call_operand.vmem [shape: f32[8,1], index: 2, kind: input, shape index: {}]
  %s3 = inlined_call_operand.vmem [shape: f32[2,8,256], index: 3, kind: output, shape index: {}]
  %s4 = sld [smem:[#allocation0]]
  $region45: #{double_conv.5} parent=0
    _
  %s6 = ssub.s32 1, %s4
  %s7 = scalar_select 0, %s6, %s4
  loop: start=0, step=1, limit=4
  $region2: #{double_conv.5} parent=0 // loop_pre_header
    _
  $region3: #{double_conv.5} parent=0 // loop_header
    %s9 = sphi 0, %s13
    %p10 = scmp.ge.s32.totalorder %s9, 4
    %s16 = sphi 0, %s28
    %s17 = sphi 0, %s24
    %s18 = sphi 0, %s16
    %s19 = sphi 0, %s17
    %s20 = sphi 0, %s18
    %s21 = sphi 0, %s19
    %s33 = sphi 0, %s35
    %s36 = sphi 0, %s33
    %s37 = sphi 0, %s36
    %s53 = sphi 0, %s37
    %s57 = sphi 0, %s57
    %s59 = sphi 0, %s57
    %s60 = sphi 0, %s59
    %s74 = sphi 0, %s60
    %s78 = sphi 0, %s78
    %s80 = sphi 0, %s78
    %s81 = sphi 0, %s80
    %s95 = sphi 0, %s81
    %s103 = sphi 0, %s105
    %s106 = sphi 0, %s103
    %s107 = sphi 0, %s106
    %s123 = sphi 0, %s107
  $region4: #{double_conv.5} parent=0 // loop_header_branch
    %12 = sbr.rel (%p10) target = $region8
  $region5: #{double_conv.5} parent=0 // loop_body
    %s14 = ssub.s32 %s9, 1
    %s15 = ssub.s32 %s9, 2
    %s22 = sadd.s32 1, %s17
    %p23 = scmp.ge.s32.totalorder %s22, 1
    %s24 = scalar_select %p23, 0, %s22
    %s25 = sadd.s32 1, %s16
    %s26 = scalar_select %p23, %s25, %s16
    %p27 = scmp.ge.s32.totalorder %s26, 2
    %s28 = scalar_select %p27, 0, %s26
    %s29 = ssub.s32 %s16, %s28
    %s30 = ssub.s32 %s17, %s24
    %s31 = sor.u32 %s29, %s30
    %p32 = scmp.eq.s32.totalorder %s31, 0
    %s34 = sadd.s32 %s33, 1
    %s35 = scalar_select %p32, %s33, %s34
    %p38 = pneg %p32
    %p39 = scmp.eq.s32.totalorder %s9, 1
    %p40 = por %p38, %p39
    %p41 = scmp.ne.s32.totalorder %s33, %s36
    %p42 = scmp.eq.s32.totalorder %s9, 0
    %p43 = por %p41, %p42
    %p44 = scmp.ne.s32.totalorder %s33, %s36
    %p45 = scmp.eq.s32.totalorder %s14, 1
    %p46 = por %p44, %p45
    %p47 = scmp.ne.s32.totalorder %s36, %s37
    %p48 = scmp.eq.s32.totalorder %s14, 0
    %p49 = por %p47, %p48
    %p50 = scmp.ne.s32.totalorder %s36, %s37
    %p51 = scmp.eq.s32.totalorder %s15, 1
    %p52 = por %p50, %p51
    %p54 = scmp.ne.s32.totalorder %s37, %s53
    %p55 = scmp.eq.s32.totalorder %s15, 0
    %p56 = por %p54, %p55
    %s58 = sadd.s32 %s57, 1
    %p61 = scmp.eq.s32.totalorder %s9, 1
    %p62 = scmp.ne.s32.totalorder %s57, %s59
    %p63 = scmp.eq.s32.totalorder %s9, 0
    %p64 = por %p62, %p63
    %p65 = scmp.ne.s32.totalorder %s57, %s59
    %p66 = scmp.eq.s32.totalorder %s14, 1
    %p67 = por %p65, %p66
    %p68 = scmp.ne.s32.totalorder %s59, %s60
    %p69 = scmp.eq.s32.totalorder %s14, 0
    %p70 = por %p68, %p69
    %p71 = scmp.ne.s32.totalorder %s59, %s60
    %p72 = scmp.eq.s32.totalorder %s15, 1
    %p73 = por %p71, %p72
    %p75 = scmp.ne.s32.totalorder %s60, %s74
    %p76 = scmp.eq.s32.totalorder %s15, 0
    %p77 = por %p75, %p76
    %s79 = sadd.s32 %s78, 1
    %p82 = scmp.eq.s32.totalorder %s9, 1
    %p83 = scmp.ne.s32.totalorder %s78, %s80
    %p84 = scmp.eq.s32.totalorder %s9, 0
    %p85 = por %p83, %p84
    %p86 = scmp.ne.s32.totalorder %s78, %s80
    %p87 = scmp.eq.s32.totalorder %s14, 1
    %p88 = por %p86, %p87
    %p89 = scmp.ne.s32.totalorder %s80, %s81
    %p90 = scmp.eq.s32.totalorder %s14, 0
    %p91 = por %p89, %p90
    %p92 = scmp.ne.s32.totalorder %s80, %s81
    %p93 = scmp.eq.s32.totalorder %s15, 1
    %p94 = por %p92, %p93
    %p96 = scmp.ne.s32.totalorder %s81, %s95
    %p97 = scmp.eq.s32.totalorder %s15, 0
    %p98 = por %p96, %p97
    %s99 = ssub.s32 %s16, %s28
    %s100 = ssub.s32 %s17, %s24
    %s101 = sor.u32 %s99, %s100
    %p102 = scmp.eq.s32.totalorder %s101, 0
    %s104 = sadd.s32 %s103, 1
    %s105 = scalar_select %p102, %s103, %s104
    %p108 = pneg %p102
    %p109 = scmp.eq.s32.totalorder %s9, 1
    %p110 = por %p108, %p109
    %p111 = scmp.ne.s32.totalorder %s103, %s106
    %p112 = scmp.eq.s32.totalorder %s9, 0
    %p113 = por %p111, %p112
    %p114 = scmp.ne.s32.totalorder %s103, %s106
    %p115 = scmp.eq.s32.totalorder %s14, 1
    %p116 = por %p114, %p115
    %p117 = scmp.ne.s32.totalorder %s106, %s107
    %p118 = scmp.eq.s32.totalorder %s14, 0
    %p119 = por %p117, %p118
    %p120 = scmp.ne.s32.totalorder %s106, %s107
    %p121 = scmp.eq.s32.totalorder %s15, 1
    %p122 = por %p120, %p121
    %p124 = scmp.ne.s32.totalorder %s107, %s123
    %p125 = scmp.eq.s32.totalorder %s15, 0
    %p126 = por %p124, %p125
    %p127 = scmp.le.s32.totalorder 1, %s9
    %p128 = scmp.lt.s32.totalorder %s9, 3
    %p129 = pnand %p127, %p128
    %p130 = pneg %p129
    // Predicated region
    $region9: #{double_conv.5} parent=5 // pred_check
      _
    $region10: #{double_conv.5} parent=5 // pred_check_branch
      %132 = sbr.rel (%p129) target = $region12
    $region11: #{double_conv.5} parent=5 // pred_region
      %s133 = ssub.s32 %s9, 1
      // Predicated region
      $region13: #{double_conv.5} parent=11 // pred_check
        %p134 = pneg %p70
      $region14: #{double_conv.5} parent=11 // pred_check_branch
        %136 = sbr.rel (%p134) target = $region16
      $region15: #{double_conv.5} parent=11 // pred_region
        _
      $region16: #{double_conv.5} parent=11 // pred_fallthru
        _
      // Predicated region
      $region17: #{double_conv.5} parent=11 // pred_check
        %p137 = pneg %p91
      $region18: #{double_conv.5} parent=11 // pred_check_branch
        %139 = sbr.rel (%p137) target = $region20
      $region19: #{double_conv.5} parent=11 // pred_region
        _
      $region20: #{double_conv.5} parent=11 // pred_fallthru
        _
    $region12: #{double_conv.5} parent=5 // pred_fallthru
      _
    %p140 = scmp.lt.s32.totalorder %s9, 2
    // Predicated region
    $region21: #{double_conv.5} parent=5 // pred_check
      %p141 = pneg %p140
    $region22: #{double_conv.5} parent=5 // pred_check_branch
      %143 = sbr.rel (%p141) target = $region24
    $region23: #{double_conv.5} parent=5 // pred_region
      // Predicated region
      $region25: #{double_conv.5} parent=23 // pred_check
        %p144 = pneg %p43
      $region26: #{double_conv.5} parent=23 // pred_check_branch
        %146 = sbr.rel (%p144) target = $region28
      $region27: #{double_conv.5} parent=23 // pred_region
        %s147 = smul.u32 2, %s17
        %p148 = scmp.lt.s32.totalorder %s16, 1
        %s149 = scalar_select %p148, %s16, 1
        %p150 = scmp.lt.s32.totalorder %s147, 1
        %s151 = scalar_select %p150, %s147, 1
        %s152 = smul.addr %s149, 2
        %s153 = sadd.s32 %s151, %s152
        %s154 = smul.addr %s153, 4
        %s155 = scalar_lea.vmem %s0, %s154
        %s156 = smul.u32 2, %s17
      $region28: #{double_conv.5} parent=23 // pred_fallthru
        _
    $region24: #{double_conv.5} parent=5 // pred_fallthru
      _
    %p157 = scmp.le.s32.totalorder 1, %s9
    %p158 = scmp.lt.s32.totalorder %s9, 3
    %p159 = pnand %p157, %p158
    %p160 = pneg %p159
    // Predicated region
    $region29: #{double_conv.5} parent=5 // pred_check
      _
    $region30: #{double_conv.5} parent=5 // pred_check_branch
      %162 = sbr.rel (%p159) target = $region32
    $region31: #{double_conv.5} parent=5 // pred_region
      %s163 = ssub.s32 %s9, 1
      %s164 = smul.u32 2, %s19
      %p165 = scmp.lt.s32.totalorder %s18, 1
      %s166 = scalar_select %p165, %s18, 1
      %p167 = scmp.lt.s32.totalorder %s164, 1
      %s168 = scalar_select %p167, %s164, 1
      %s169 = smul.addr %s166, 2
      %s170 = sadd.s32 %s168, %s169
      %s171 = smul.addr %s170, 4
      %s172 = scalar_lea.vmem %s0, %s171
      %p173 = pneg %p49
      %p174 = pneg %p46
      %p175 = pneg %p70
      %p176 = pneg %p67
      %p177 = pneg %p91
      %p178 = pneg %p88
      %p179 = pneg %p119
      %p180 = pneg %p116
      %s181 = smul.u32 2, %s19
      %p182 = scmp.lt.s32.totalorder %s18, 1
      %s183 = scalar_select %p182, %s18, 1
      %p184 = scmp.lt.s32.totalorder %s181, 1
      %s185 = scalar_select %p184, %s181, 1
      %s186 = smul.addr %s183, 2
      %s187 = sadd.s32 %s185, %s186
      %s188 = smul.addr %s187, 8
      %s189 = scalar_lea.vmem %s3, %s188
      %s190 = smul.u32 2, %s19
      %p191 = scmp.lt.s32.totalorder %s18, 1
      %s192 = scalar_select %p191, %s18, 1
      %p193 = scmp.lt.s32.totalorder %s190, 1
      %s194 = scalar_select %p193, %s190, 1
      %s195 = smul.addr %s192, 2
      %s196 = sadd.s32 %s194, %s195
      %s197 = smul.addr %s196, 4
      %s198 = scalar_lea.vmem %s0, %s197
      %s199 = smul.u32 2, %s19
      %s200 = smul.u32 2, %s19
      %p201 = scmp.lt.s32.totalorder %s18, 1
      %s202 = scalar_select %p201, %s18, 1
      %p203 = scmp.lt.s32.totalorder %s200, 1
      %s204 = scalar_select %p203, %s200, 1
      %s205 = smul.addr %s202, 2
      %s206 = sadd.s32 %s204, %s205
      %s207 = smul.addr %s206, 8
      %s208 = scalar_lea.vmem %s3, %s207
      %s209 = smul.u32 2, %s19
      %v210 = vld [vmem:[%s198] sm:$0xff]
      %v211 = vunpack.c.l.bf16 %v210
      %v212 = vunpack.c.h.bf16 %v210
      %v213 = vld [vmem:[%s1] sm:$0xff]
      %215 = vset.pattern.permute.xlu0 0
      %216 = vperm.xlu0 %215, %v213
      %v217 = vpop.permute.xlu0 %216
      %v219 = vmul.f32 %v211, %v217
      %v220 = vmul.f32 %v212, %v217
      %v221 = vld [vmem:[%s2] sm:$0xff]
      %223 = vset.pattern.permute.xlu0 0
      %224 = vperm.xlu0 %223, %v221
      %v225 = vpop.permute.xlu0 %224
      %v227 = vadd.f32 %v219, %v225
      %v228 = vadd.f32 %v220, %v225
      %v229 = vmax.f32 %v227, 0.0
      %v230 = vmax.f32 %v228, 0.0
      %231 = vst [vmem:[%s208] sm:$0xff] %v229
      %232 = vst [vmem:[%s208 + $0x8] sm:$0xff] %v230
      %s233 = smul.u32 2, %s19
      %p234 = scmp.lt.s32.totalorder %s18, 1
      %s235 = scalar_select %p234, %s18, 1
      %p236 = scmp.lt.s32.totalorder %s233, 1
      %s237 = scalar_select %p236, %s233, 1
      %s238 = smul.addr %s235, 2
      %s239 = sadd.s32 %s237, %s238
      %s240 = smul.addr %s239, 8
      %s241 = scalar_lea.vmem %s3, %s240
      // Predicated region
      $region33: #{double_conv.5} parent=31 // pred_check
        %p242 = pneg %p116
      $region34: #{double_conv.5} parent=31 // pred_check_branch
        %244 = sbr.rel (%p242) target = $region36
      $region35: #{double_conv.5} parent=31 // pred_region
        %s245 = smul.u32 2, %s19
      $region36: #{double_conv.5} parent=31 // pred_fallthru
        _
    $region32: #{double_conv.5} parent=5 // pred_fallthru
      _
    %p246 = scmp.le.s32.totalorder 2, %s9
    // Predicated region
    $region37: #{double_conv.5} parent=5 // pred_check
      %p247 = pneg %p246
    $region38: #{double_conv.5} parent=5 // pred_check_branch
      %249 = sbr.rel (%p247) target = $region40
    $region39: #{double_conv.5} parent=5 // pred_region
      %s250 = ssub.s32 %s9, 2
      // Predicated region
      $region41: #{double_conv.5} parent=39 // pred_check
        %p251 = pneg %p122
      $region42: #{double_conv.5} parent=39 // pred_check_branch
        %253 = sbr.rel (%p251) target = $region44
      $region43: #{double_conv.5} parent=39 // pred_region
        %s254 = smul.u32 2, %s21
        %p255 = scmp.lt.s32.totalorder %s20, 1
        %s256 = scalar_select %p255, %s20, 1
        %p257 = scmp.lt.s32.totalorder %s254, 1
        %s258 = scalar_select %p257, %s254, 1
        %s259 = smul.addr %s256, 2
        %s260 = sadd.s32 %s258, %s259
        %s261 = smul.addr %s260, 8
        %s262 = scalar_lea.vmem %s3, %s261
      $region44: #{double_conv.5} parent=39 // pred_fallthru
        _
    $region40: #{double_conv.5} parent=5 // pred_fallthru
      _
  $region6: #{double_conv.5} parent=0 // loop_footer
    %s13 = sadd.s32 1, %s9
  $region7: #{double_conv.5} parent=0 // loop_footer_branch
    %8 = sbr.rel target = $region3
  $region8: #{double_conv.5} parent=0 // loop_exit
    _

// kernel: double_conv.3
$region0: #{double_conv.3}
  #allocation0 [shape = 'u32[]', space=smem, size = 0x4, offset = 0x4, fixed_abs, tag = 'smem constant byte address 0x4 - core index']
  #allocation1 [shape = 'u32[144,128]{1,0:T(1,128)}', space=vmem, size = 0x12000, scoped, tag = 'internal scratch']
  #allocation2 [shape = 'bf16[4,512]{1,0:T(4,128)(2,1)}', space=vmem, size = 0x1000, scoped, tag = 'scratch operand']
  %s0 = inlined_call_operand.vmem [shape: f32[2,4,256], index: 0, kind: input, shape index: {}]
  %s1 = inlined_call_operand.vmem [shape: bf16[9,8,4], index: 1, kind: input, shape index: {}]
  %s2 = inlined_call_operand.vmem [shape: f32[2,256], index: 2, kind: input, shape index: {}]
  %s3 = inlined_call_operand.vmem [shape: bf16[2,8,256], index: 3, kind: output, shape index: {0}]
  %s4 = inlined_call_operand.vmem [shape: f32[2,8,2], index: 4, kind: output, shape index: {1}]
  %5 = xla_tuple %s3, %s4
  %s6 = sld [smem:[#allocation0]]
  $region53: #{double_conv.3} parent=0
    _
  %s8 = ssub.s32 1, %s6
  %s9 = scalar_select 0, %s8, %s6
  loop: start=0, step=1, limit=4
  $region2: #{double_conv.3} parent=0 // loop_pre_header
    _
  $region3: #{double_conv.3} parent=0 // loop_header
    %s11 = sphi 0, %s15
    %p12 = scmp.ge.s32.totalorder %s11, 4
    %s21 = sphi 0, %s23
    %s24 = sphi 0, %s21
    %s25 = sphi 0, %s24
    %s41 = sphi 0, %s25
    %s45 = sphi 0, %s45
    %s47 = sphi 0, %s45
    %s48 = sphi 0, %s47
    %s62 = sphi 0, %s48
    %s66 = sphi 0, %s66
    %s68 = sphi 0, %s66
    %s69 = sphi 0, %s68
    %s83 = sphi 0, %s69
    %s89 = sphi 0, %s91
    %s92 = sphi 0, %s89
    %s93 = sphi 0, %s92
    %s109 = sphi 0, %s93
    %s115 = sphi 0, %s117
    %s118 = sphi 0, %s115
    %s119 = sphi 0, %s118
    %s135 = sphi 0, %s119
  $region4: #{double_conv.3} parent=0 // loop_header_branch
    %14 = sbr.rel (%p12) target = $region8
  $region5: #{double_conv.3} parent=0 // loop_body
    %s16 = ssub.s32 %s11, 1
    %s17 = ssub.s32 %s11, 2
    %s18 = sadd.s32 %s11, 1
    %s19 = ssub.s32 %s11, %s18
    %p20 = scmp.eq.s32.totalorder %s19, 0
    %s22 = sadd.s32 %s21, 1
    %s23 = scalar_select %p20, %s21, %s22
    %p26 = pneg %p20
    %p27 = scmp.eq.s32.totalorder %s11, 1
    %p28 = por %p26, %p27
    %p29 = scmp.ne.s32.totalorder %s21, %s24
    %p30 = scmp.eq.s32.totalorder %s11, 0
    %p31 = por %p29, %p30
    %p32 = scmp.ne.s32.totalorder %s21, %s24
    %p33 = scmp.eq.s32.totalorder %s16, 1
    %p34 = por %p32, %p33
    %p35 = scmp.ne.s32.totalorder %s24, %s25
    %p36 = scmp.eq.s32.totalorder %s16, 0
    %p37 = por %p35, %p36
    %p38 = scmp.ne.s32.totalorder %s24, %s25
    %p39 = scmp.eq.s32.totalorder %s17, 1
    %p40 = por %p38, %p39
    %p42 = scmp.ne.s32.totalorder %s25, %s41
    %p43 = scmp.eq.s32.totalorder %s17, 0
    %p44 = por %p42, %p43
    %s46 = sadd.s32 %s45, 1
    %p49 = scmp.eq.s32.totalorder %s11, 1
    %p50 = scmp.ne.s32.totalorder %s45, %s47
    %p51 = scmp.eq.s32.totalorder %s11, 0
    %p52 = por %p50, %p51
    %p53 = scmp.ne.s32.totalorder %s45, %s47
    %p54 = scmp.eq.s32.totalorder %s16, 1
    %p55 = por %p53, %p54
    %p56 = scmp.ne.s32.totalorder %s47, %s48
    %p57 = scmp.eq.s32.totalorder %s16, 0
    %p58 = por %p56, %p57
    %p59 = scmp.ne.s32.totalorder %s47, %s48
    %p60 = scmp.eq.s32.totalorder %s17, 1
    %p61 = por %p59, %p60
    %p63 = scmp.ne.s32.totalorder %s48, %s62
    %p64 = scmp.eq.s32.totalorder %s17, 0
    %p65 = por %p63, %p64
    %s67 = sadd.s32 %s66, 1
    %p70 = scmp.eq.s32.totalorder %s11, 1
    %p71 = scmp.ne.s32.totalorder %s66, %s68
    %p72 = scmp.eq.s32.totalorder %s11, 0
    %p73 = por %p71, %p72
    %p74 = scmp.ne.s32.totalorder %s66, %s68
    %p75 = scmp.eq.s32.totalorder %s16, 1
    %p76 = por %p74, %p75
    %p77 = scmp.ne.s32.totalorder %s68, %s69
    %p78 = scmp.eq.s32.totalorder %s16, 0
    %p79 = por %p77, %p78
    %p80 = scmp.ne.s32.totalorder %s68, %s69
    %p81 = scmp.eq.s32.totalorder %s17, 1
    %p82 = por %p80, %p81
    %p84 = scmp.ne.s32.totalorder %s69, %s83
    %p85 = scmp.eq.s32.totalorder %s17, 0
    %p86 = por %p84, %p85
    %s87 = ssub.s32 %s11, %s18
    %p88 = scmp.eq.s32.totalorder %s87, 0
    %s90 = sadd.s32 %s89, 1
    %s91 = scalar_select %p88, %s89, %s90
    %p94 = pneg %p88
    %p95 = scmp.eq.s32.totalorder %s11, 1
    %p96 = por %p94, %p95
    %p97 = scmp.ne.s32.totalorder %s89, %s92
    %p98 = scmp.eq.s32.totalorder %s11, 0
    %p99 = por %p97, %p98
    %p100 = scmp.ne.s32.totalorder %s89, %s92
    %p101 = scmp.eq.s32.totalorder %s16, 1
    %p102 = por %p100, %p101
    %p103 = scmp.ne.s32.totalorder %s92, %s93
    %p104 = scmp.eq.s32.totalorder %s16, 0
    %p105 = por %p103, %p104
    %p106 = scmp.ne.s32.totalorder %s92, %s93
    %p107 = scmp.eq.s32.totalorder %s17, 1
    %p108 = por %p106, %p107
    %p110 = scmp.ne.s32.totalorder %s93, %s109
    %p111 = scmp.eq.s32.totalorder %s17, 0
    %p112 = por %p110, %p111
    %s113 = ssub.s32 %s11, %s18
    %p114 = scmp.eq.s32.totalorder %s113, 0
    %s116 = sadd.s32 %s115, 1
    %s117 = scalar_select %p114, %s115, %s116
    %p120 = pneg %p114
    %p121 = scmp.eq.s32.totalorder %s11, 1
    %p122 = por %p120, %p121
    %p123 = scmp.ne.s32.totalorder %s115, %s118
    %p124 = scmp.eq.s32.totalorder %s11, 0
    %p125 = por %p123, %p124
    %p126 = scmp.ne.s32.totalorder %s115, %s118
    %p127 = scmp.eq.s32.totalorder %s16, 1
    %p128 = por %p126, %p127
    %p129 = scmp.ne.s32.totalorder %s118, %s119
    %p130 = scmp.eq.s32.totalorder %s16, 0
    %p131 = por %p129, %p130
    %p132 = scmp.ne.s32.totalorder %s118, %s119
    %p133 = scmp.eq.s32.totalorder %s17, 1
    %p134 = por %p132, %p133
    %p136 = scmp.ne.s32.totalorder %s119, %s135
    %p137 = scmp.eq.s32.totalorder %s17, 0
    %p138 = por %p136, %p137
    %p139 = scmp.le.s32.totalorder 1, %s11
    %p140 = scmp.lt.s32.totalorder %s11, 3
    %p141 = pnand %p139, %p140
    %p142 = pneg %p141
    // Predicated region
    $region9: #{double_conv.3} parent=5 // pred_check
      _
    $region10: #{double_conv.3} parent=5 // pred_check_branch
      %144 = sbr.rel (%p141) target = $region12
    $region11: #{double_conv.3} parent=5 // pred_region
      %s145 = ssub.s32 %s11, 1
      // Predicated region
      $region13: #{double_conv.3} parent=11 // pred_check
        %p146 = pneg %p58
      $region14: #{double_conv.3} parent=11 // pred_check_branch
        %148 = sbr.rel (%p146) target = $region16
      $region15: #{double_conv.3} parent=11 // pred_region
        _
      $region16: #{double_conv.3} parent=11 // pred_fallthru
        _
      // Predicated region
      $region17: #{double_conv.3} parent=11 // pred_check
        %p149 = pneg %p79
      $region18: #{double_conv.3} parent=11 // pred_check_branch
        %151 = sbr.rel (%p149) target = $region20
      $region19: #{double_conv.3} parent=11 // pred_region
        _
      $region20: #{double_conv.3} parent=11 // pred_fallthru
        _
    $region12: #{double_conv.3} parent=5 // pred_fallthru
      _
    %p152 = scmp.lt.s32.totalorder %s11, 2
    // Predicated region
    $region21: #{double_conv.3} parent=5 // pred_check
      %p153 = pneg %p152
    $region22: #{double_conv.3} parent=5 // pred_check_branch
      %155 = sbr.rel (%p153) target = $region24
    $region23: #{double_conv.3} parent=5 // pred_region
      // Predicated region
      $region25: #{double_conv.3} parent=23 // pred_check
        %p156 = pneg %p31
      $region26: #{double_conv.3} parent=23 // pred_check_branch
        %158 = sbr.rel (%p156) target = $region28
      $region27: #{double_conv.3} parent=23 // pred_region
        %p159 = scmp.lt.s32.totalorder %s11, 1
        %s160 = scalar_select %p159, %s11, 1
        %s161 = smul.addr %s160, 2
        %s162 = smul.addr %s161, 4
        %s163 = scalar_lea.vmem %s0, %s162
      $region28: #{double_conv.3} parent=23 // pred_fallthru
        _
    $region24: #{double_conv.3} parent=5 // pred_fallthru
      _
    %p164 = scmp.le.s32.totalorder 1, %s11
    %p165 = scmp.lt.s32.totalorder %s11, 3
    %p166 = pnand %p164, %p165
    %p167 = pneg %p166
    // Predicated region
    $region29: #{double_conv.3} parent=5 // pred_check
      _
    $region30: #{double_conv.3} parent=5 // pred_check_branch
      %169 = sbr.rel (%p166) target = $region32
    $region31: #{double_conv.3} parent=5 // pred_region
      %s170 = ssub.s32 %s11, 1
      %p171 = scmp.lt.s32.totalorder %s16, 1
      %s172 = scalar_select %p171, %s16, 1
      %s173 = smul.addr %s172, 2
      %s174 = smul.addr %s173, 4
      %s175 = scalar_lea.vmem %s0, %s174
      %p176 = pneg %p37
      %p177 = pneg %p34
      %p178 = pneg %p58
      %p179 = pneg %p55
      %p180 = pneg %p79
      %p181 = pneg %p76
      %p182 = pneg %p105
      %p183 = pneg %p102
      %p184 = scmp.lt.s32.totalorder %s16, 1
      %s185 = scalar_select %p184, %s16, 1
      %s186 = smul.addr %s185, 2
      %s187 = smul.addr %s186, 4
      %s188 = scalar_lea.vmem %s3, %s187
      %p189 = pneg %p131
      %p190 = pneg %p128
      %p191 = scmp.lt.s32.totalorder %s16, 1
      %s192 = scalar_select %p191, %s16, 1
      %s193 = smul.addr %s192, 8
      %s194 = scalar_lea.vmem %s4, %s193
      %p195 = scmp.lt.s32.totalorder %s16, 1
      %s196 = scalar_select %p195, %s16, 1
      %s197 = smul.addr %s196, 2
      %s198 = smul.addr %s197, 4
      %s199 = scalar_lea.vmem %s0, %s198
      %p200 = scmp.lt.s32.totalorder %s16, 1
      %s201 = scalar_select %p200, %s16, 1
      %s202 = smul.addr %s201, 2
      %s203 = smul.addr %s202, 4
      %s204 = scalar_lea.vmem %s3, %s203
      %p205 = scmp.lt.s32.totalorder %s16, 1
      %s206 = scalar_select %p205, %s16, 1
      %s207 = smul.addr %s206, 8
      %s208 = scalar_lea.vmem %s4, %s207
      %v210 = vld [vmem:[%s199] sm:$0xff]
      %211 = vst [vmem:[#allocation2] sm:$0x3] 0
      %212 = vst [vmem:[#allocation2 + $0x6] sm:$0x3] 0
      %v214 = vcombine.high %v210, %v210
      %v216 = vpack.c.bf16 %v210, %v210
      %v217 = vpack.c.bf16 %v214, %v214
      %v220 = vcombine.low %v216, %v217
      %v222 = vunpack.c.l.s4 1983009808
      %v223 = vunpack.c.0.s8 %v222
      %v224 = vlaneseq
      %v225 = vshrl.u32 %v224, 7
      %v226 = vsub.s32 %v223, %v225
      %v227 = vrot.slane %v220, %v226
      %229 = vst [vmem:[#allocation2 + $0x2] sm:$0xf] %v227
      %v230 = vld [vmem:[#allocation2] sm:$0x3f]
      %v231 = vld [vmem:[%s1] sm:$0xf]
      %s232 = scalar_lea.vmem %s1, 12
      %v233 = vld [vmem:[%s232] sm:$0xf]
      %v235 = vcombine.high %v230, %v230
      %v237 = vunpack.c.l.s4 1983009808
      %v238 = vunpack.c.0.s8 %v237
      %v239 = vlaneseq
      %v240 = vshrl.u32 %v239, 7
      %v241 = vsub.s32 %v238, %v240
      %v242 = vrot.slane %v230, %v241
      %v244 = vunpack.c.l.s4 1983009808
      %v245 = vunpack.c.0.s8 %v244
      %v246 = vlaneseq
      %v247 = vshrl.u32 %v246, 7
      %v248 = vsub.s32 %v245, %v247
      %v249 = vrot.slane %v235, %v248
      %v250 = vcombine.high %v242, %v242
      %251 = vrot.lane.b32.xlu0 %v242, 1
      %v252 = vpop.permute.xlu0 %251
      %253 = vrot.lane.b32.xlu0 %v250, 1
      %v254 = vpop.permute.xlu0 %253
      %255 = vrot.lane.b32.xlu0 %v249, 1
      %v256 = vpop.permute.xlu0 %255
      %vm257 = vcmask 7168
      %v258 = vsel %vm257, %v252, %v254
      %v259 = vsel %vm257, %v254, %v256
      %vm260 = vcmask 31744
      %v262 = vsel %vm260, %v233, 0
      %vm264 = vcmask 1041408
      %v266 = vsel %vm264, %v258, 0
      %v269 = vsel %vm264, %v259, 0
      %271 = vmatprep.subr.bf16.mxu0 0
      %272 = vmatpush1.bf16.msra.mxu0 0
      %273 = vmatprep.subr.bf16.mxu0 0
      %274 = vmatpush1.bf16.msra.mxu0 0
      %275 = vmatprep.subr.bf16.mxu0 0
      %276 = vmatpush1.bf16.msra.mxu0 0
      %277 = vmatprep.subr.bf16.mxu0 0
      %278 = vmatpush1.bf16.msra.mxu0 0
      %279 = vmatprep.subr.bf16.mxu0 0
      %280 = vmatpush1.bf16.msra.mxu0 0
      %281 = vmatprep.subr.bf16.mxu0 0
      %282 = vmatpush1.bf16.msra.mxu0 0
      %283 = vmatprep.subr.bf16.mxu0 0
      %284 = vmatpush1.bf16.msra.mxu0 0
      %285 = vmatprep.subr.bf16.mxu0 %v269
      %286 = vmatpush1.bf16.msra.mxu0 %v266
      %287 = vmatprep.subr.bf16.mxu0 0
      %288 = vmatpush2.bf16.msra.mxu0 0
      %289 = vmatprep.subr.bf16.mxu0 0
      %290 = vmatpush2.bf16.msra.mxu0 0
      %291 = vmatprep.subr.bf16.mxu0 0
      %292 = vmatpush2.bf16.msra.mxu0 0
      %293 = vmatprep.subr.bf16.mxu0 0
      %294 = vmatpush2.bf16.msra.mxu0 0
      %295 = vmatprep.subr.bf16.mxu0 0
      %296 = vmatpush2.bf16.msra.mxu0 0
      %297 = vmatprep.subr.bf16.mxu0 0
      %298 = vmatpush2.bf16.msra.mxu0 0
      %299 = vmatprep.subr.bf16.mxu0 0
      %300 = vmatpush2.bf16.msra.mxu0 0
      %301 = vmatprep.subr.bf16.mxu0 0
      %302 = vmatpush2.bf16.msra.mxu0 0
      %303 = vmatprep.mubr.bf16.mxu0 0
      %304 = vmatmul.mubr.bf16.gmra.mxu0 %v262
      %v305 = vpop.f32.mrf.mxu0
      %v306 = vadd.f32 0.0, %v305
      %v307 = vpop.f32.mrf.mxu0
      %v308 = vadd.f32 0.0, %v307
      %v309 = vpop.f32.mrf.mxu0
      %v310 = vpop.f32.mrf.mxu0
      %311 = vdwg.mxu0
      %312 = vrot.lane.b32.xlu0 %v242, 17
      %v313 = vpop.permute.xlu0 %312
      %314 = vrot.lane.b32.xlu0 %v250, 17
      %v315 = vpop.permute.xlu0 %314
      %316 = vrot.lane.b32.xlu0 %v249, 17
      %v317 = vpop.permute.xlu0 %316
      %vm318 = vcmask 138240
      %v319 = vsel %vm318, %v313, %v315
      %v320 = vsel %vm318, %v315, %v317
      %v322 = vsel %vm260, %v231, 0
      %v325 = vsel %vm264, %v319, 0
      %v328 = vsel %vm264, %v320, 0
      %330 = vmatprep.subr.bf16.mxu0 0
      %331 = vmatpush1.bf16.msra.mxu0 0
      %332 = vmatprep.subr.bf16.mxu0 0
      %333 = vmatpush1.bf16.msra.mxu0 0
      %334 = vmatprep.subr.bf16.mxu0 0
      %335 = vmatpush1.bf16.msra.mxu0 0
      %336 = vmatprep.subr.bf16.mxu0 0
      %337 = vmatpush1.bf16.msra.mxu0 0
      %338 = vmatprep.subr.bf16.mxu0 0
      %339 = vmatpush1.bf16.msra.mxu0 0
      %340 = vmatprep.subr.bf16.mxu0 0
      %341 = vmatpush1.bf16.msra.mxu0 0
      %342 = vmatprep.subr.bf16.mxu0 0
      %343 = vmatpush1.bf16.msra.mxu0 0
      %344 = vmatprep.subr.bf16.mxu0 %v328
      %345 = vmatpush1.bf16.msra.mxu0 %v325
      %346 = vmatprep.subr.bf16.mxu0 0
      %347 = vmatpush2.bf16.msra.mxu0 0
      %348 = vmatprep.subr.bf16.mxu0 0
      %349 = vmatpush2.bf16.msra.mxu0 0
      %350 = vmatprep.subr.bf16.mxu0 0
      %351 = vmatpush2.bf16.msra.mxu0 0
      %352 = vmatprep.subr.bf16.mxu0 0
      %353 = vmatpush2.bf16.msra.mxu0 0
      %354 = vmatprep.subr.bf16.mxu0 0
      %355 = vmatpush2.bf16.msra.mxu0 0
      %356 = vmatprep.subr.bf16.mxu0 0
      %357 = vmatpush2.bf16.msra.mxu0 0
      %358 = vmatprep.subr.bf16.mxu0 0
      %359 = vmatpush2.bf16.msra.mxu0 0
      %360 = vmatprep.subr.bf16.mxu0 0
      %361 = vmatpush2.bf16.msra.mxu0 0
      %362 = vmatprep.mubr.bf16.mxu0 0
      %363 = vmatmul.mubr.bf16.gmra.mxu0 %v322
      %v364 = vpop.f32.mrf.mxu0
      %v365 = vadd.f32 %v306, %v364
      %v366 = vpop.f32.mrf.mxu0
      %v367 = vadd.f32 %v308, %v366
      %v368 = vpop.f32.mrf.mxu0
      %v369 = vpop.f32.mrf.mxu0
      %370 = vdwg.mxu0
      %v371 = vld [vmem:[#allocation2 + $0x2] sm:$0x3f]
      %s372 = scalar_lea.vmem %s1, 24
      %v373 = vld [vmem:[%s372] sm:$0xf]
      %v375 = vcombine.high %v371, %v371
      %v377 = vunpack.c.l.s4 1983009808
      %v378 = vunpack.c.0.s8 %v377
      %v379 = vlaneseq
      %v380 = vshrl.u32 %v379, 7
      %v381 = vsub.s32 %v378, %v380
      %v382 = vrot.slane %v371, %v381
      %v384 = vunpack.c.l.s4 1983009808
      %v385 = vunpack.c.0.s8 %v384
      %v386 = vlaneseq
      %v387 = vshrl.u32 %v386, 7
      %v388 = vsub.s32 %v385, %v387
      %v389 = vrot.slane %v375, %v388
      %v390 = vcombine.high %v382, %v382
      %391 = vrot.lane.b32.xlu0 %v382, 113
      %v392 = vpop.permute.xlu0 %391
      %393 = vrot.lane.b32.xlu0 %v390, 113
      %v394 = vpop.permute.xlu0 %393
      %395 = vrot.lane.b32.xlu0 %v389, 113
      %v396 = vpop.permute.xlu0 %395
      %vm397 = vcmask 924672
      %v398 = vsel %vm397, %v392, %v394
      %v399 = vsel %vm397, %v394, %v396
      %v401 = vsel %vm260, %v373, 0
      %v404 = vsel %vm264, %v398, 0
      %v407 = vsel %vm264, %v399, 0
      %409 = vmatprep.subr.bf16.mxu0 0
      %410 = vmatpush1.bf16.msra.mxu0 0
      %411 = vmatprep.subr.bf16.mxu0 0
      %412 = vmatpush1.bf16.msra.mxu0 0
      %413 = vmatprep.subr.bf16.mxu0 0
      %414 = vmatpush1.bf16.msra.mxu0 0
      %415 = vmatprep.subr.bf16.mxu0 0
      %416 = vmatpush1.bf16.msra.mxu0 0
      %417 = vmatprep.subr.bf16.mxu0 0
      %418 = vmatpush1.bf16.msra.mxu0 0
      %419 = vmatprep.subr.bf16.mxu0 0
      %420 = vmatpush1.bf16.msra.mxu0 0
      %421 = vmatprep.subr.bf16.mxu0 0
      %422 = vmatpush1.bf16.msra.mxu0 0
      %423 = vmatprep.subr.bf16.mxu0 %v407
      %424 = vmatpush1.bf16.msra.mxu0 %v404
      %425 = vmatprep.subr.bf16.mxu0 0
      %426 = vmatpush2.bf16.msra.mxu0 0
      %427 = vmatprep.subr.bf16.mxu0 0
      %428 = vmatpush2.bf16.msra.mxu0 0
      %429 = vmatprep.subr.bf16.mxu0 0
      %430 = vmatpush2.bf16.msra.mxu0 0
      %431 = vmatprep.subr.bf16.mxu0 0
      %432 = vmatpush2.bf16.msra.mxu0 0
      %433 = vmatprep.subr.bf16.mxu0 0
      %434 = vmatpush2.bf16.msra.mxu0 0
      %435 = vmatprep.subr.bf16.mxu0 0
      %436 = vmatpush2.bf16.msra.mxu0 0
      %437 = vmatprep.subr.bf16.mxu0 0
      %438 = vmatpush2.bf16.msra.mxu0 0
      %439 = vmatprep.subr.bf16.mxu0 0
      %440 = vmatpush2.bf16.msra.mxu0 0
      %441 = vmatprep.mubr.bf16.mxu0 0
      %442 = vmatmul.mubr.bf16.gmra.mxu0 %v401
      %v443 = vpop.f32.mrf.mxu0
      %v444 = vadd.f32 0.0, %v443
      %v445 = vpop.f32.mrf.mxu0
      %v446 = vadd.f32 0.0, %v445
      %v447 = vpop.f32.mrf.mxu0
      %v448 = vpop.f32.mrf.mxu0
      %449 = vdwg.mxu0
      %v450 = vadd.f32 %v365, %v444
      %v451 = vadd.f32 %v367, %v446
      %v452 = vld [vmem:[%s2] ss:$2 sm:$0x3]
      %v454 = vlaneseq
      %v455 = vshrl.u32 %v454, 7
      %v456 = vsub.s32 0, %v455
      %v457 = vrot.slane %v452, %v456
      %v458 = vlaneseq
      %v459 = vshrl.u32 %v458, 7
      %v460 = vsub.s32 1, %v459
      %v461 = vrot.slane %v452, %v460
      %v464 = vmul.f32 %v450, %v457
      %v465 = vmul.f32 %v451, %v461
      %v466 = vadd.f32 %v464, 0.0
      %v467 = vadd.f32 %v465, 0.0
      %v468 = vld [vmem:[#allocation2] sm:$0x3f]
      %s469 = scalar_lea.vmem %s1, 4
      %v470 = vld [vmem:[%s469] sm:$0xf]
      %v471 = vld [vmem:[#allocation2 + $0x2] sm:$0xf]
      %s472 = scalar_lea.vmem %s1, 16
      %v473 = vld [vmem:[%s472] sm:$0xf]
      %v476 = vunpack.c.l.s4 1983009808
      %v477 = vunpack.c.0.s8 %v476
      %v478 = vlaneseq
      %v479 = vshrl.u32 %v478, 7
      %v480 = vsub.s32 %v477, %v479
      %v481 = vrot.slane %v471, %v480
      %v482 = vcombine.high %v481, %v481
      %v484 = vsel %vm260, %v473, 0
      %v487 = vsel %vm264, %v481, 0
      %v490 = vsel %vm264, %v482, 0
      %492 = vmatprep.subr.bf16.mxu0 0
      %493 = vmatpush1.bf16.msra.mxu0 0
      %494 = vmatprep.subr.bf16.mxu0 0
      %495 = vmatpush1.bf16.msra.mxu0 0
      %496 = vmatprep.subr.bf16.mxu0 0
      %497 = vmatpush1.bf16.msra.mxu0 0
      %498 = vmatprep.subr.bf16.mxu0 0
      %499 = vmatpush1.bf16.msra.mxu0 0
      %500 = vmatprep.subr.bf16.mxu0 0
      %501 = vmatpush1.bf16.msra.mxu0 0
      %502 = vmatprep.subr.bf16.mxu0 0
      %503 = vmatpush1.bf16.msra.mxu0 0
      %504 = vmatprep.subr.bf16.mxu0 0
      %505 = vmatpush1.bf16.msra.mxu0 0
      %506 = vmatprep.subr.bf16.mxu0 %v490
      %507 = vmatpush1.bf16.msra.mxu0 %v487
      %508 = vmatprep.subr.bf16.mxu0 0
      %509 = vmatpush2.bf16.msra.mxu0 0
      %510 = vmatprep.subr.bf16.mxu0 0
      %511 = vmatpush2.bf16.msra.mxu0 0
      %512 = vmatprep.subr.bf16.mxu0 0
      %513 = vmatpush2.bf16.msra.mxu0 0
      %514 = vmatprep.subr.bf16.mxu0 0
      %515 = vmatpush2.bf16.msra.mxu0 0
      %516 = vmatprep.subr.bf16.mxu0 0
      %517 = vmatpush2.bf16.msra.mxu0 0
      %518 = vmatprep.subr.bf16.mxu0 0
      %519 = vmatpush2.bf16.msra.mxu0 0
      %520 = vmatprep.subr.bf16.mxu0 0
      %521 = vmatpush2.bf16.msra.mxu0 0
      %522 = vmatprep.subr.bf16.mxu0 0
      %523 = vmatpush2.bf16.msra.mxu0 0
      %524 = vmatprep.mubr.bf16.mxu0 0
      %525 = vmatmul.mubr.bf16.gmra.mxu0 %v484
      %v526 = vpop.f32.mrf.mxu0
      %v527 = vadd.f32 0.0, %v526
      %v528 = vpop.f32.mrf.mxu0
      %v529 = vadd.f32 0.0, %v528
      %v530 = vpop.f32.mrf.mxu0
      %v531 = vpop.f32.mrf.mxu0
      %532 = vdwg.mxu0
      %v534 = vcombine.high %v468, %v468
      %v536 = vunpack.c.l.s4 1983009808
      %v537 = vunpack.c.0.s8 %v536
      %v538 = vlaneseq
      %v539 = vshrl.u32 %v538, 7
      %v540 = vsub.s32 %v537, %v539
      %v541 = vrot.slane %v468, %v540
      %v543 = vunpack.c.l.s4 1983009808
      %v544 = vunpack.c.0.s8 %v543
      %v545 = vlaneseq
      %v546 = vshrl.u32 %v545, 7
      %v547 = vsub.s32 %v544, %v546
      %v548 = vrot.slane %v534, %v547
      %v549 = vcombine.high %v541, %v541
      %550 = vrot.lane.b32.xlu0 %v541, 16
      %v551 = vpop.permute.xlu0 %550
      %552 = vrot.lane.b32.xlu0 %v549, 16
      %v553 = vpop.permute.xlu0 %552
      %554 = vrot.lane.b32.xlu0 %v548, 16
      %v555 = vpop.permute.xlu0 %554
      %vm556 = vcmask 130048
      %v557 = vsel %vm556, %v551, %v553
      %v558 = vsel %vm556, %v553, %v555
      %v560 = vsel %vm260, %v470, 0
      %v563 = vsel %vm264, %v557, 0
      %v566 = vsel %vm264, %v558, 0
      %568 = vmatprep.subr.bf16.mxu0 0
      %569 = vmatpush1.bf16.msra.mxu0 0
      %570 = vmatprep.subr.bf16.mxu0 0
      %571 = vmatpush1.bf16.msra.mxu0 0
      %572 = vmatprep.subr.bf16.mxu0 0
      %573 = vmatpush1.bf16.msra.mxu0 0
      %574 = vmatprep.subr.bf16.mxu0 0
      %575 = vmatpush1.bf16.msra.mxu0 0
      %576 = vmatprep.subr.bf16.mxu0 0
      %577 = vmatpush1.bf16.msra.mxu0 0
      %578 = vmatprep.subr.bf16.mxu0 0
      %579 = vmatpush1.bf16.msra.mxu0 0
      %580 = vmatprep.subr.bf16.mxu0 0
      %581 = vmatpush1.bf16.msra.mxu0 0
      %582 = vmatprep.subr.bf16.mxu0 %v566
      %583 = vmatpush1.bf16.msra.mxu0 %v563
      %584 = vmatprep.subr.bf16.mxu0 0
      %585 = vmatpush2.bf16.msra.mxu0 0
      %586 = vmatprep.subr.bf16.mxu0 0
      %587 = vmatpush2.bf16.msra.mxu0 0
      %588 = vmatprep.subr.bf16.mxu0 0
      %589 = vmatpush2.bf16.msra.mxu0 0
      %590 = vmatprep.subr.bf16.mxu0 0
      %591 = vmatpush2.bf16.msra.mxu0 0
      %592 = vmatprep.subr.bf16.mxu0 0
      %593 = vmatpush2.bf16.msra.mxu0 0
      %594 = vmatprep.subr.bf16.mxu0 0
      %595 = vmatpush2.bf16.msra.mxu0 0
      %596 = vmatprep.subr.bf16.mxu0 0
      %597 = vmatpush2.bf16.msra.mxu0 0
      %598 = vmatprep.subr.bf16.mxu0 0
      %599 = vmatpush2.bf16.msra.mxu0 0
      %600 = vmatprep.mubr.bf16.mxu0 0
      %601 = vmatmul.mubr.bf16.gmra.mxu0 %v560
      %v602 = vpop.f32.mrf.mxu0
      %v603 = vadd.f32 %v527, %v602
      %v604 = vpop.f32.mrf.mxu0
      %v605 = vadd.f32 %v529, %v604
      %v606 = vpop.f32.mrf.mxu0
      %v607 = vpop.f32.mrf.mxu0
      %608 = vdwg.mxu0
      %v609 = vld [vmem:[#allocation2 + $0x2] sm:$0x3f]
      %s610 = scalar_lea.vmem %s1, 28
      %v611 = vld [vmem:[%s610] sm:$0xf]
      %v613 = vcombine.high %v609, %v609
      %v615 = vunpack.c.l.s4 1983009808
      %v616 = vunpack.c.0.s8 %v615
      %v617 = vlaneseq
      %v618 = vshrl.u32 %v617, 7
      %v619 = vsub.s32 %v616, %v618
      %v620 = vrot.slane %v609, %v619
      %v622 = vunpack.c.l.s4 1983009808
      %v623 = vunpack.c.0.s8 %v622
      %v624 = vlaneseq
      %v625 = vshrl.u32 %v624, 7
      %v626 = vsub.s32 %v623, %v625
      %v627 = vrot.slane %v613, %v626
      %v628 = vcombine.high %v620, %v620
      %629 = vrot.lane.b32.xlu0 %v620, 112
      %v630 = vpop.permute.xlu0 %629
      %631 = vrot.lane.b32.xlu0 %v628, 112
      %v632 = vpop.permute.xlu0 %631
      %633 = vrot.lane.b32.xlu0 %v627, 112
      %v634 = vpop.permute.xlu0 %633
      %vm635 = vcmask 916480
      %v636 = vsel %vm635, %v630, %v632
      %v637 = vsel %vm635, %v632, %v634
      %v639 = vsel %vm260, %v611, 0
      %v642 = vsel %vm264, %v636, 0
      %v645 = vsel %vm264, %v637, 0
      %647 = vmatprep.subr.bf16.mxu0 0
      %648 = vmatpush1.bf16.msra.mxu0 0
      %649 = vmatprep.subr.bf16.mxu0 0
      %650 = vmatpush1.bf16.msra.mxu0 0
      %651 = vmatprep.subr.bf16.mxu0 0
      %652 = vmatpush1.bf16.msra.mxu0 0
      %653 = vmatprep.subr.bf16.mxu0 0
      %654 = vmatpush1.bf16.msra.mxu0 0
      %655 = vmatprep.subr.bf16.mxu0 0
      %656 = vmatpush1.bf16.msra.mxu0 0
      %657 = vmatprep.subr.bf16.mxu0 0
      %658 = vmatpush1.bf16.msra.mxu0 0
      %659 = vmatprep.subr.bf16.mxu0 0
      %660 = vmatpush1.bf16.msra.mxu0 0
      %661 = vmatprep.subr.bf16.mxu0 %v645
      %662 = vmatpush1.bf16.msra.mxu0 %v642
      %663 = vmatprep.subr.bf16.mxu0 0
      %664 = vmatpush2.bf16.msra.mxu0 0
      %665 = vmatprep.subr.bf16.mxu0 0
      %666 = vmatpush2.bf16.msra.mxu0 0
      %667 = vmatprep.subr.bf16.mxu0 0
      %668 = vmatpush2.bf16.msra.mxu0 0
      %669 = vmatprep.subr.bf16.mxu0 0
      %670 = vmatpush2.bf16.msra.mxu0 0
      %671 = vmatprep.subr.bf16.mxu0 0
      %672 = vmatpush2.bf16.msra.mxu0 0
      %673 = vmatprep.subr.bf16.mxu0 0
      %674 = vmatpush2.bf16.msra.mxu0 0
      %675 = vmatprep.subr.bf16.mxu0 0
      %676 = vmatpush2.bf16.msra.mxu0 0
      %677 = vmatprep.subr.bf16.mxu0 0
      %678 = vmatpush2.bf16.msra.mxu0 0
      %679 = vmatprep.mubr.bf16.mxu0 0
      %680 = vmatmul.mubr.bf16.gmra.mxu0 %v639
      %v681 = vpop.f32.mrf.mxu0
      %v682 = vadd.f32 0.0, %v681
      %v683 = vpop.f32.mrf.mxu0
      %v684 = vadd.f32 0.0, %v683
      %v685 = vpop.f32.mrf.mxu0
      %v686 = vpop.f32.mrf.mxu0
      %687 = vdwg.mxu0
      %v688 = vadd.f32 %v603, %v682
      %v689 = vadd.f32 %v605, %v684
      %v690 = vadd.f32 %v466, %v688
      %v691 = vadd.f32 %v467, %v689
      %v692 = vld [vmem:[#allocation2] sm:$0x3f]
      %s693 = scalar_lea.vmem %s1, 8
      %v694 = vld [vmem:[%s693] sm:$0xf]
      %v695 = vld [vmem:[#allocation2 + $0x2] sm:$0x3f]
      %s696 = scalar_lea.vmem %s1, 20
      %v697 = vld [vmem:[%s696] sm:$0xf]
      %v699 = vcombine.high %v695, %v695
      %v701 = vunpack.c.l.s4 1983009808
      %v702 = vunpack.c.0.s8 %v701
      %v703 = vlaneseq
      %v704 = vshrl.u32 %v703, 7
      %v705 = vsub.s32 %v702, %v704
      %v706 = vrot.slane %v695, %v705
      %v708 = vunpack.c.l.s4 1983009808
      %v709 = vunpack.c.0.s8 %v708
      %v710 = vlaneseq
      %v711 = vshrl.u32 %v710, 7
      %v712 = vsub.s32 %v709, %v711
      %v713 = vrot.slane %v699, %v712
      %v714 = vcombine.high %v706, %v706
      %715 = vrot.lane.b32.xlu0 %v706, 127
      %v716 = vpop.permute.xlu0 %715
      %717 = vrot.lane.b32.xlu0 %v714, 127
      %v718 = vpop.permute.xlu0 %717
      %719 = vrot.lane.b32.xlu0 %v713, 127
      %v720 = vpop.permute.xlu0 %719
      %vm721 = vcmask 1039360
      %v722 = vsel %vm721, %v716, %v718
      %v723 = vsel %vm721, %v718, %v720
      %v725 = vsel %vm260, %v697, 0
      %v728 = vsel %vm264, %v722, 0
      %v731 = vsel %vm264, %v723, 0
      %733 = vmatprep.subr.bf16.mxu0 0
      %734 = vmatpush1.bf16.msra.mxu0 0
      %735 = vmatprep.subr.bf16.mxu0 0
      %736 = vmatpush1.bf16.msra.mxu0 0
      %737 = vmatprep.subr.bf16.mxu0 0
      %738 = vmatpush1.bf16.msra.mxu0 0
      %739 = vmatprep.subr.bf16.mxu0 0
      %740 = vmatpush1.bf16.msra.mxu0 0
      %741 = vmatprep.subr.bf16.mxu0 0
      %742 = vmatpush1.bf16.msra.mxu0 0
      %743 = vmatprep.subr.bf16.mxu0 0
      %744 = vmatpush1.bf16.msra.mxu0 0
      %745 = vmatprep.subr.bf16.mxu0 0
      %746 = vmatpush1.bf16.msra.mxu0 0
      %747 = vmatprep.subr.bf16.mxu0 %v731
      %748 = vmatpush1.bf16.msra.mxu0 %v728
      %749 = vmatprep.subr.bf16.mxu0 0
      %750 = vmatpush2.bf16.msra.mxu0 0
      %751 = vmatprep.subr.bf16.mxu0 0
      %752 = vmatpush2.bf16.msra.mxu0 0
      %753 = vmatprep.subr.bf16.mxu0 0
      %754 = vmatpush2.bf16.msra.mxu0 0
      %755 = vmatprep.subr.bf16.mxu0 0
      %756 = vmatpush2.bf16.msra.mxu0 0
      %757 = vmatprep.subr.bf16.mxu0 0
      %758 = vmatpush2.bf16.msra.mxu0 0
      %759 = vmatprep.subr.bf16.mxu0 0
      %760 = vmatpush2.bf16.msra.mxu0 0
      %761 = vmatprep.subr.bf16.mxu0 0
      %762 = vmatpush2.bf16.msra.mxu0 0
      %763 = vmatprep.subr.bf16.mxu0 0
      %764 = vmatpush2.bf16.msra.mxu0 0
      %765 = vmatprep.mubr.bf16.mxu0 0
      %766 = vmatmul.mubr.bf16.gmra.mxu0 %v725
      %v767 = vpop.f32.mrf.mxu0
      %v768 = vadd.f32 0.0, %v767
      %v769 = vpop.f32.mrf.mxu0
      %v770 = vadd.f32 0.0, %v769
      %v771 = vpop.f32.mrf.mxu0
      %v772 = vpop.f32.mrf.mxu0
      %773 = vdwg.mxu0
      %v775 = vcombine.high %v692, %v692
      %v777 = vunpack.c.l.s4 1983009808
      %v778 = vunpack.c.0.s8 %v777
      %v779 = vlaneseq
      %v780 = vshrl.u32 %v779, 7
      %v781 = vsub.s32 %v778, %v780
      %v782 = vrot.slane %v692, %v781
      %v784 = vunpack.c.l.s4 1983009808
      %v785 = vunpack.c.0.s8 %v784
      %v786 = vlaneseq
      %v787 = vshrl.u32 %v786, 7
      %v788 = vsub.s32 %v785, %v787
      %v789 = vrot.slane %v775, %v788
      %v790 = vcombine.high %v782, %v782
      %791 = vrot.lane.b32.xlu0 %v782, 15
      %v792 = vpop.permute.xlu0 %791
      %793 = vrot.lane.b32.xlu0 %v790, 15
      %v794 = vpop.permute.xlu0 %793
      %795 = vrot.lane.b32.xlu0 %v789, 15
      %v796 = vpop.permute.xlu0 %795
      %vm797 = vcmask 121856
      %v798 = vsel %vm797, %v792, %v794
      %v799 = vsel %vm797, %v794, %v796
      %v801 = vsel %vm260, %v694, 0
      %v804 = vsel %vm264, %v798, 0
      %v807 = vsel %vm264, %v799, 0
      %809 = vmatprep.subr.bf16.mxu0 0
      %810 = vmatpush1.bf16.msra.mxu0 0
      %811 = vmatprep.subr.bf16.mxu0 0
      %812 = vmatpush1.bf16.msra.mxu0 0
      %813 = vmatprep.subr.bf16.mxu0 0
      %814 = vmatpush1.bf16.msra.mxu0 0
      %815 = vmatprep.subr.bf16.mxu0 0
      %816 = vmatpush1.bf16.msra.mxu0 0
      %817 = vmatprep.subr.bf16.mxu0 0
      %818 = vmatpush1.bf16.msra.mxu0 0
      %819 = vmatprep.subr.bf16.mxu0 0
      %820 = vmatpush1.bf16.msra.mxu0 0
      %821 = vmatprep.subr.bf16.mxu0 0
      %822 = vmatpush1.bf16.msra.mxu0 0
      %823 = vmatprep.subr.bf16.mxu0 %v807
      %824 = vmatpush1.bf16.msra.mxu0 %v804
      %825 = vmatprep.subr.bf16.mxu0 0
      %826 = vmatpush2.bf16.msra.mxu0 0
      %827 = vmatprep.subr.bf16.mxu0 0
      %828 = vmatpush2.bf16.msra.mxu0 0
      %829 = vmatprep.subr.bf16.mxu0 0
      %830 = vmatpush2.bf16.msra.mxu0 0
      %831 = vmatprep.subr.bf16.mxu0 0
      %832 = vmatpush2.bf16.msra.mxu0 0
      %833 = vmatprep.subr.bf16.mxu0 0
      %834 = vmatpush2.bf16.msra.mxu0 0
      %835 = vmatprep.subr.bf16.mxu0 0
      %836 = vmatpush2.bf16.msra.mxu0 0
      %837 = vmatprep.subr.bf16.mxu0 0
      %838 = vmatpush2.bf16.msra.mxu0 0
      %839 = vmatprep.subr.bf16.mxu0 0
      %840 = vmatpush2.bf16.msra.mxu0 0
      %841 = vmatprep.mubr.bf16.mxu0 0
      %842 = vmatmul.mubr.bf16.gmra.mxu0 %v801
      %v843 = vpop.f32.mrf.mxu0
      %v844 = vadd.f32 %v768, %v843
      %v845 = vpop.f32.mrf.mxu0
      %v846 = vadd.f32 %v770, %v845
      %v847 = vpop.f32.mrf.mxu0
      %v848 = vpop.f32.mrf.mxu0
      %849 = vdwg.mxu0
      %v850 = vld [vmem:[#allocation2 + $0x2] sm:$0x3f]
      %s851 = scalar_lea.vmem %s1, 32
      %v852 = vld [vmem:[%s851] sm:$0xf]
      %v854 = vcombine.high %v850, %v850
      %v856 = vunpack.c.l.s4 1983009808
      %v857 = vunpack.c.0.s8 %v856
      %v858 = vlaneseq
      %v859 = vshrl.u32 %v858, 7
      %v860 = vsub.s32 %v857, %v859
      %v861 = vrot.slane %v850, %v860
      %v863 = vunpack.c.l.s4 1983009808
      %v864 = vunpack.c.0.s8 %v863
      %v865 = vlaneseq
      %v866 = vshrl.u32 %v865, 7
      %v867 = vsub.s32 %v864, %v866
      %v868 = vrot.slane %v854, %v867
      %v869 = vcombine.high %v861, %v861
      %870 = vrot.lane.b32.xlu0 %v861, 111
      %v871 = vpop.permute.xlu0 %870
      %872 = vrot.lane.b32.xlu0 %v869, 111
      %v873 = vpop.permute.xlu0 %872
      %874 = vrot.lane.b32.xlu0 %v868, 111
      %v875 = vpop.permute.xlu0 %874
      %vm876 = vcmask 908288
      %v877 = vsel %vm876, %v871, %v873
      %v878 = vsel %vm876, %v873, %v875
      %v880 = vsel %vm260, %v852, 0
      %v883 = vsel %vm264, %v877, 0
      %v886 = vsel %vm264, %v878, 0
      %888 = vmatprep.subr.bf16.mxu0 0
      %889 = vmatpush1.bf16.msra.mxu0 0
      %890 = vmatprep.subr.bf16.mxu0 0
      %891 = vmatpush1.bf16.msra.mxu0 0
      %892 = vmatprep.subr.bf16.mxu0 0
      %893 = vmatpush1.bf16.msra.mxu0 0
      %894 = vmatprep.subr.bf16.mxu0 0
      %895 = vmatpush1.bf16.msra.mxu0 0
      %896 = vmatprep.subr.bf16.mxu0 0
      %897 = vmatpush1.bf16.msra.mxu0 0
      %898 = vmatprep.subr.bf16.mxu0 0
      %899 = vmatpush1.bf16.msra.mxu0 0
      %900 = vmatprep.subr.bf16.mxu0 0
      %901 = vmatpush1.bf16.msra.mxu0 0
      %902 = vmatprep.subr.bf16.mxu0 %v886
      %903 = vmatpush1.bf16.msra.mxu0 %v883
      %904 = vmatprep.subr.bf16.mxu0 0
      %905 = vmatpush2.bf16.msra.mxu0 0
      %906 = vmatprep.subr.bf16.mxu0 0
      %907 = vmatpush2.bf16.msra.mxu0 0
      %908 = vmatprep.subr.bf16.mxu0 0
      %909 = vmatpush2.bf16.msra.mxu0 0
      %910 = vmatprep.subr.bf16.mxu0 0
      %911 = vmatpush2.bf16.msra.mxu0 0
      %912 = vmatprep.subr.bf16.mxu0 0
      %913 = vmatpush2.bf16.msra.mxu0 0
      %914 = vmatprep.subr.bf16.mxu0 0
      %915 = vmatpush2.bf16.msra.mxu0 0
      %916 = vmatprep.subr.bf16.mxu0 0
      %917 = vmatpush2.bf16.msra.mxu0 0
      %918 = vmatprep.subr.bf16.mxu0 0
      %919 = vmatpush2.bf16.msra.mxu0 0
      %920 = vmatprep.mubr.bf16.mxu0 0
      %921 = vmatmul.mubr.bf16.gmra.mxu0 %v880
      %v922 = vpop.f32.mrf.mxu0
      %v923 = vadd.f32 0.0, %v922
      %v924 = vpop.f32.mrf.mxu0
      %v925 = vadd.f32 0.0, %v924
      %v926 = vpop.f32.mrf.mxu0
      %v927 = vpop.f32.mrf.mxu0
      %928 = vdwg.mxu0
      %v929 = vadd.f32 %v844, %v923
      %v930 = vadd.f32 %v846, %v925
      %s931 = scalar_lea.vmem %s2, 1
      %v932 = vld [vmem:[%s931] ss:$2 sm:$0x3]
      %v934 = vlaneseq
      %v935 = vshrl.u32 %v934, 7
      %v936 = vsub.s32 0, %v935
      %v937 = vrot.slane %v932, %v936
      %v938 = vlaneseq
      %v939 = vshrl.u32 %v938, 7
      %v940 = vsub.s32 1, %v939
      %v941 = vrot.slane %v932, %v940
      %v944 = vmul.f32 %v929, %v937
      %v945 = vmul.f32 %v930, %v941
      %v946 = vadd.f32 %v690, %v944
      %v947 = vadd.f32 %v691, %v945
      %v948 = vpack.c.bf16 %v946, %v946
      %v949 = vpack.c.bf16 %v947, %v947
      %v952 = vunpack.c.l.b16 %v948
      %v953 = vunpack.c.l.b16 %v949
      %v954 = vpack.c.b16 %v953, %v952
      %956 = vst [vmem:[%s204] sm:$0xff] %v954
      %v957 = vadd.f32 %v946, %v947
      %958 = vadd.xlane.f32.xlu0 %v957
      %v959 = vpop.xlane.xlu0 %958
      %vm960 = vcmask 7168
      %961 = vst.msk [vmem:[%s208] sm:$0xff] %vm960, %v959
      %v962 = vmul.f32 %v946, %v946
      %v963 = vmul.f32 %v947, %v947
      %v964 = vadd.f32 %v962, %v963
      %965 = vadd.xlane.f32.xlu0 %v964
      %v966 = vpop.xlane.xlu0 %965
      %vm967 = vcmask 15368
      %968 = vst.msk [vmem:[%s208] sm:$0xff] %vm967, %v966
      %p969 = scmp.lt.s32.totalorder %s16, 1
      %s970 = scalar_select %p969, %s16, 1
      %s971 = smul.addr %s970, 2
      %s972 = smul.addr %s971, 4
      %s973 = scalar_lea.vmem %s3, %s972
      %p974 = scmp.lt.s32.totalorder %s16, 1
      %s975 = scalar_select %p974, %s16, 1
      %s976 = smul.addr %s975, 8
      %s977 = scalar_lea.vmem %s4, %s976
      // Predicated region
      $region33: #{double_conv.3} parent=31 // pred_check
        %p978 = pneg %p102
      $region34: #{double_conv.3} parent=31 // pred_check_branch
        %980 = sbr.rel (%p978) target = $region36
      $region35: #{double_conv.3} parent=31 // pred_region
        _
      $region36: #{double_conv.3} parent=31 // pred_fallthru
        _
      // Predicated region
      $region37: #{double_conv.3} parent=31 // pred_check
        %p981 = pneg %p128
      $region38: #{double_conv.3} parent=31 // pred_check_branch
        %983 = sbr.rel (%p981) target = $region40
      $region39: #{double_conv.3} parent=31 // pred_region
        _
      $region40: #{double_conv.3} parent=31 // pred_fallthru
        _
    $region32: #{double_conv.3} parent=5 // pred_fallthru
      _
    %p984 = scmp.le.s32.totalorder 2, %s11
    // Predicated region
    $region41: #{double_conv.3} parent=5 // pred_check
      %p985 = pneg %p984
    $region42: #{double_conv.3} parent=5 // pred_check_branch
      %987 = sbr.rel (%p985) target = $region44
    $region43: #{double_conv.3} parent=5 // pred_region
      %s988 = ssub.s32 %s11, 2
      // Predicated region
      $region45: #{double_conv.3} parent=43 // pred_check
        %p989 = pneg %p108
      $region46: #{double_conv.3} parent=43 // pred_check_branch
        %991 = sbr.rel (%p989) target = $region48
      $region47: #{double_conv.3} parent=43 // pred_region
        %p992 = scmp.lt.s32.totalorder %s17, 1
        %s993 = scalar_select %p992, %s17, 1
        %s994 = smul.addr %s993, 2
        %s995 = smul.addr %s994, 4
        %s996 = scalar_lea.vmem %s3, %s995
      $region48: #{double_conv.3} parent=43 // pred_fallthru
        _
      // Predicated region
      $region49: #{double_conv.3} parent=43 // pred_check
        %p997 = pneg %p134
      $region50: #{double_conv.3} parent=43 // pred_check_branch
        %999 = sbr.rel (%p997) target = $region52
      $region51: #{double_conv.3} parent=43 // pred_region
        %p1000 = scmp.lt.s32.totalorder %s17, 1
        %s1001 = scalar_select %p1000, %s17, 1
        %s1002 = smul.addr %s1001, 8
        %s1003 = scalar_lea.vmem %s4, %s1002
      $region52: #{double_conv.3} parent=43 // pred_fallthru
        _
    $region44: #{double_conv.3} parent=5 // pred_fallthru
      _
  $region6: #{double_conv.3} parent=0 // loop_footer
    %s15 = sadd.s32 1, %s11
  $region7: #{double_conv.3} parent=0 // loop_footer_branch
    %10 = sbr.rel target = $region3
  $region8: #{double_conv.3} parent=0 // loop_exit
    _

// kernel: double_conv.4
$region0: #{double_conv.4}
  #allocation0 [shape = 'u32[]', space=smem, size = 0x4, offset = 0x4, fixed_abs, tag = 'smem constant byte address 0x4 - core index']
  #allocation1 [shape = 'u32[144,128]{1,0:T(1,128)}', space=vmem, size = 0x12000, scoped, tag = 'internal scratch']
  #allocation2 [shape = 'bf16[8,512]{1,0:T(8,128)(2,1)}', space=vmem, size = 0x2000, scoped, tag = 'scratch operand']
  %s0 = inlined_call_operand.vmem [shape: bf16[2,8,256], index: 0, kind: input, shape index: {}]
  %s1 = inlined_call_operand.vmem [shape: bf16[9,8,8], index: 1, kind: input, shape index: {}]
  %s2 = inlined_call_operand.vmem [shape: f32[2,256], index: 2, kind: input, shape index: {}]
  %s3 = inlined_call_operand.vmem [shape: f32[8,1], index: 3, kind: input, shape index: {}]
  %s4 = inlined_call_operand.vmem [shape: f32[8,1], index: 4, kind: input, shape index: {}]
  %s5 = inlined_call_operand.vmem [shape: bf16[2,8,256], index: 5, kind: output, shape index: {0}]
  %s6 = inlined_call_operand.vmem [shape: f32[2,8,2], index: 6, kind: output, shape index: {1}]
  %7 = xla_tuple %s5, %s6
  %s8 = sld [smem:[#allocation0]]
  $region61: #{double_conv.4} parent=0
    _
  %s10 = ssub.s32 1, %s8
  %s11 = scalar_select 0, %s10, %s8
  loop: start=0, step=1, limit=4
  $region2: #{double_conv.4} parent=0 // loop_pre_header
    _
  $region3: #{double_conv.4} parent=0 // loop_header
    %s13 = sphi 0, %s17
    %p14 = scmp.ge.s32.totalorder %s13, 4
    %s23 = sphi 0, %s25
    %s26 = sphi 0, %s23
    %s27 = sphi 0, %s26
    %s43 = sphi 0, %s27
    %s47 = sphi 0, %s47
    %s49 = sphi 0, %s47
    %s50 = sphi 0, %s49
    %s64 = sphi 0, %s50
    %s68 = sphi 0, %s68
    %s70 = sphi 0, %s68
    %s71 = sphi 0, %s70
    %s85 = sphi 0, %s71
    %s89 = sphi 0, %s89
    %s91 = sphi 0, %s89
    %s92 = sphi 0, %s91
    %s106 = sphi 0, %s92
    %s110 = sphi 0, %s110
    %s112 = sphi 0, %s110
    %s113 = sphi 0, %s112
    %s127 = sphi 0, %s113
    %s133 = sphi 0, %s135
    %s136 = sphi 0, %s133
    %s137 = sphi 0, %s136
    %s153 = sphi 0, %s137
    %s159 = sphi 0, %s161
    %s162 = sphi 0, %s159
    %s163 = sphi 0, %s162
    %s179 = sphi 0, %s163
  $region4: #{double_conv.4} parent=0 // loop_header_branch
    %16 = sbr.rel (%p14) target = $region8
  $region5: #{double_conv.4} parent=0 // loop_body
    %s18 = ssub.s32 %s13, 1
    %s19 = ssub.s32 %s13, 2
    %s20 = sadd.s32 %s13, 1
    %s21 = ssub.s32 %s13, %s20
    %p22 = scmp.eq.s32.totalorder %s21, 0
    %s24 = sadd.s32 %s23, 1
    %s25 = scalar_select %p22, %s23, %s24
    %p28 = pneg %p22
    %p29 = scmp.eq.s32.totalorder %s13, 1
    %p30 = por %p28, %p29
    %p31 = scmp.ne.s32.totalorder %s23, %s26
    %p32 = scmp.eq.s32.totalorder %s13, 0
    %p33 = por %p31, %p32
    %p34 = scmp.ne.s32.totalorder %s23, %s26
    %p35 = scmp.eq.s32.totalorder %s18, 1
    %p36 = por %p34, %p35
    %p37 = scmp.ne.s32.totalorder %s26, %s27
    %p38 = scmp.eq.s32.totalorder %s18, 0
    %p39 = por %p37, %p38
    %p40 = scmp.ne.s32.totalorder %s26, %s27
    %p41 = scmp.eq.s32.totalorder %s19, 1
    %p42 = por %p40, %p41
    %p44 = scmp.ne.s32.totalorder %s27, %s43
    %p45 = scmp.eq.s32.totalorder %s19, 0
    %p46 = por %p44, %p45
    %s48 = sadd.s32 %s47, 1
    %p51 = scmp.eq.s32.totalorder %s13, 1
    %p52 = scmp.ne.s32.totalorder %s47, %s49
    %p53 = scmp.eq.s32.totalorder %s13, 0
    %p54 = por %p52, %p53
    %p55 = scmp.ne.s32.totalorder %s47, %s49
    %p56 = scmp.eq.s32.totalorder %s18, 1
    %p57 = por %p55, %p56
    %p58 = scmp.ne.s32.totalorder %s49, %s50
    %p59 = scmp.eq.s32.totalorder %s18, 0
    %p60 = por %p58, %p59
    %p61 = scmp.ne.s32.totalorder %s49, %s50
    %p62 = scmp.eq.s32.totalorder %s19, 1
    %p63 = por %p61, %p62
    %p65 = scmp.ne.s32.totalorder %s50, %s64
    %p66 = scmp.eq.s32.totalorder %s19, 0
    %p67 = por %p65, %p66
    %s69 = sadd.s32 %s68, 1
    %p72 = scmp.eq.s32.totalorder %s13, 1
    %p73 = scmp.ne.s32.totalorder %s68, %s70
    %p74 = scmp.eq.s32.totalorder %s13, 0
    %p75 = por %p73, %p74
    %p76 = scmp.ne.s32.totalorder %s68, %s70
    %p77 = scmp.eq.s32.totalorder %s18, 1
    %p78 = por %p76, %p77
    %p79 = scmp.ne.s32.totalorder %s70, %s71
    %p80 = scmp.eq.s32.totalorder %s18, 0
    %p81 = por %p79, %p80
    %p82 = scmp.ne.s32.totalorder %s70, %s71
    %p83 = scmp.eq.s32.totalorder %s19, 1
    %p84 = por %p82, %p83
    %p86 = scmp.ne.s32.totalorder %s71, %s85
    %p87 = scmp.eq.s32.totalorder %s19, 0
    %p88 = por %p86, %p87
    %s90 = sadd.s32 %s89, 1
    %p93 = scmp.eq.s32.totalorder %s13, 1
    %p94 = scmp.ne.s32.totalorder %s89, %s91
    %p95 = scmp.eq.s32.totalorder %s13, 0
    %p96 = por %p94, %p95
    %p97 = scmp.ne.s32.totalorder %s89, %s91
    %p98 = scmp.eq.s32.totalorder %s18, 1
    %p99 = por %p97, %p98
    %p100 = scmp.ne.s32.totalorder %s91, %s92
    %p101 = scmp.eq.s32.totalorder %s18, 0
    %p102 = por %p100, %p101
    %p103 = scmp.ne.s32.totalorder %s91, %s92
    %p104 = scmp.eq.s32.totalorder %s19, 1
    %p105 = por %p103, %p104
    %p107 = scmp.ne.s32.totalorder %s92, %s106
    %p108 = scmp.eq.s32.totalorder %s19, 0
    %p109 = por %p107, %p108
    %s111 = sadd.s32 %s110, 1
    %p114 = scmp.eq.s32.totalorder %s13, 1
    %p115 = scmp.ne.s32.totalorder %s110, %s112
    %p116 = scmp.eq.s32.totalorder %s13, 0
    %p117 = por %p115, %p116
    %p118 = scmp.ne.s32.totalorder %s110, %s112
    %p119 = scmp.eq.s32.totalorder %s18, 1
    %p120 = por %p118, %p119
    %p121 = scmp.ne.s32.totalorder %s112, %s113
    %p122 = scmp.eq.s32.totalorder %s18, 0
    %p123 = por %p121, %p122
    %p124 = scmp.ne.s32.totalorder %s112, %s113
    %p125 = scmp.eq.s32.totalorder %s19, 1
    %p126 = por %p124, %p125
    %p128 = scmp.ne.s32.totalorder %s113, %s127
    %p129 = scmp.eq.s32.totalorder %s19, 0
    %p130 = por %p128, %p129
    %s131 = ssub.s32 %s13, %s20
    %p132 = scmp.eq.s32.totalorder %s131, 0
    %s134 = sadd.s32 %s133, 1
    %s135 = scalar_select %p132, %s133, %s134
    %p138 = pneg %p132
    %p139 = scmp.eq.s32.totalorder %s13, 1
    %p140 = por %p138, %p139
    %p141 = scmp.ne.s32.totalorder %s133, %s136
    %p142 = scmp.eq.s32.totalorder %s13, 0
    %p143 = por %p141, %p142
    %p144 = scmp.ne.s32.totalorder %s133, %s136
    %p145 = scmp.eq.s32.totalorder %s18, 1
    %p146 = por %p144, %p145
    %p147 = scmp.ne.s32.totalorder %s136, %s137
    %p148 = scmp.eq.s32.totalorder %s18, 0
    %p149 = por %p147, %p148
    %p150 = scmp.ne.s32.totalorder %s136, %s137
    %p151 = scmp.eq.s32.totalorder %s19, 1
    %p152 = por %p150, %p151
    %p154 = scmp.ne.s32.totalorder %s137, %s153
    %p155 = scmp.eq.s32.totalorder %s19, 0
    %p156 = por %p154, %p155
    %s157 = ssub.s32 %s13, %s20
    %p158 = scmp.eq.s32.totalorder %s157, 0
    %s160 = sadd.s32 %s159, 1
    %s161 = scalar_select %p158, %s159, %s160
    %p164 = pneg %p158
    %p165 = scmp.eq.s32.totalorder %s13, 1
    %p166 = por %p164, %p165
    %p167 = scmp.ne.s32.totalorder %s159, %s162
    %p168 = scmp.eq.s32.totalorder %s13, 0
    %p169 = por %p167, %p168
    %p170 = scmp.ne.s32.totalorder %s159, %s162
    %p171 = scmp.eq.s32.totalorder %s18, 1
    %p172 = por %p170, %p171
    %p173 = scmp.ne.s32.totalorder %s162, %s163
    %p174 = scmp.eq.s32.totalorder %s18, 0
    %p175 = por %p173, %p174
    %p176 = scmp.ne.s32.totalorder %s162, %s163
    %p177 = scmp.eq.s32.totalorder %s19, 1
    %p178 = por %p176, %p177
    %p180 = scmp.ne.s32.totalorder %s163, %s179
    %p181 = scmp.eq.s32.totalorder %s19, 0
    %p182 = por %p180, %p181
    %p183 = scmp.le.s32.totalorder 1, %s13
    %p184 = scmp.lt.s32.totalorder %s13, 3
    %p185 = pnand %p183, %p184
    %p186 = pneg %p185
    // Predicated region
    $region9: #{double_conv.4} parent=5 // pred_check
      _
    $region10: #{double_conv.4} parent=5 // pred_check_branch
      %188 = sbr.rel (%p185) target = $region12
    $region11: #{double_conv.4} parent=5 // pred_region
      %s189 = ssub.s32 %s13, 1
      // Predicated region
      $region13: #{double_conv.4} parent=11 // pred_check
        %p190 = pneg %p60
      $region14: #{double_conv.4} parent=11 // pred_check_branch
        %192 = sbr.rel (%p190) target = $region16
      $region15: #{double_conv.4} parent=11 // pred_region
        _
      $region16: #{double_conv.4} parent=11 // pred_fallthru
        _
      // Predicated region
      $region17: #{double_conv.4} parent=11 // pred_check
        %p193 = pneg %p81
      $region18: #{double_conv.4} parent=11 // pred_check_branch
        %195 = sbr.rel (%p193) target = $region20
      $region19: #{double_conv.4} parent=11 // pred_region
        _
      $region20: #{double_conv.4} parent=11 // pred_fallthru
        _
      // Predicated region
      $region21: #{double_conv.4} parent=11 // pred_check
        %p196 = pneg %p102
      $region22: #{double_conv.4} parent=11 // pred_check_branch
        %198 = sbr.rel (%p196) target = $region24
      $region23: #{double_conv.4} parent=11 // pred_region
        _
      $region24: #{double_conv.4} parent=11 // pred_fallthru
        _
      // Predicated region
      $region25: #{double_conv.4} parent=11 // pred_check
        %p199 = pneg %p123
      $region26: #{double_conv.4} parent=11 // pred_check_branch
        %201 = sbr.rel (%p199) target = $region28
      $region27: #{double_conv.4} parent=11 // pred_region
        _
      $region28: #{double_conv.4} parent=11 // pred_fallthru
        _
    $region12: #{double_conv.4} parent=5 // pred_fallthru
      _
    %p202 = scmp.lt.s32.totalorder %s13, 2
    // Predicated region
    $region29: #{double_conv.4} parent=5 // pred_check
      %p203 = pneg %p202
    $region30: #{double_conv.4} parent=5 // pred_check_branch
      %205 = sbr.rel (%p203) target = $region32
    $region31: #{double_conv.4} parent=5 // pred_region
      // Predicated region
      $region33: #{double_conv.4} parent=31 // pred_check
        %p206 = pneg %p33
      $region34: #{double_conv.4} parent=31 // pred_check_branch
        %208 = sbr.rel (%p206) target = $region36
      $region35: #{double_conv.4} parent=31 // pred_region
        %p209 = scmp.lt.s32.totalorder %s13, 1
        %s210 = scalar_select %p209, %s13, 1
        %s211 = smul.addr %s210, 2
        %s212 = smul.addr %s211, 4
        %s213 = scalar_lea.vmem %s0, %s212
      $region36: #{double_conv.4} parent=31 // pred_fallthru
        _
    $region32: #{double_conv.4} parent=5 // pred_fallthru
      _
    %p214 = scmp.le.s32.totalorder 1, %s13
    %p215 = scmp.lt.s32.totalorder %s13, 3
    %p216 = pnand %p214, %p215
    %p217 = pneg %p216
    // Predicated region
    $region37: #{double_conv.4} parent=5 // pred_check
      _
    $region38: #{double_conv.4} parent=5 // pred_check_branch
      %219 = sbr.rel (%p216) target = $region40
    $region39: #{double_conv.4} parent=5 // pred_region
      %s220 = ssub.s32 %s13, 1
      %p221 = scmp.lt.s32.totalorder %s18, 1
      %s222 = scalar_select %p221, %s18, 1
      %s223 = smul.addr %s222, 2
      %s224 = smul.addr %s223, 4
      %s225 = scalar_lea.vmem %s0, %s224
      %p226 = pneg %p39
      %p227 = pneg %p36
      %p228 = pneg %p60
      %p229 = pneg %p57
      %p230 = pneg %p81
      %p231 = pneg %p78
      %p232 = pneg %p102
      %p233 = pneg %p99
      %p234 = pneg %p123
      %p235 = pneg %p120
      %p236 = pneg %p149
      %p237 = pneg %p146
      %p238 = scmp.lt.s32.totalorder %s18, 1
      %s239 = scalar_select %p238, %s18, 1
      %s240 = smul.addr %s239, 2
      %s241 = smul.addr %s240, 4
      %s242 = scalar_lea.vmem %s5, %s241
      %p243 = pneg %p175
      %p244 = pneg %p172
      %p245 = scmp.lt.s32.totalorder %s18, 1
      %s246 = scalar_select %p245, %s18, 1
      %s247 = smul.addr %s246, 8
      %s248 = scalar_lea.vmem %s6, %s247
      %p249 = scmp.lt.s32.totalorder %s18, 1
      %s250 = scalar_select %p249, %s18, 1
      %s251 = smul.addr %s250, 2
      %s252 = smul.addr %s251, 4
      %s253 = scalar_lea.vmem %s0, %s252
      %p254 = scmp.lt.s32.totalorder %s18, 1
      %s255 = scalar_select %p254, %s18, 1
      %s256 = smul.addr %s255, 2
      %s257 = smul.addr %s256, 4
      %s258 = scalar_lea.vmem %s5, %s257
      %p259 = scmp.lt.s32.totalorder %s18, 1
      %s260 = scalar_select %p259, %s18, 1
      %s261 = smul.addr %s260, 8
      %s262 = scalar_lea.vmem %s6, %s261
      %v264 = vld [vmem:[%s253] sm:$0xff]
      %v265 = vunpack.c.l.bf16 %v264
      %v266 = vunpack.c.h.bf16 %v264
      %v267 = vld [vmem:[%s3] sm:$0xff]
      %269 = vset.pattern.permute.xlu0 0
      %270 = vperm.xlu0 %269, %v267
      %v271 = vpop.permute.xlu0 %270
      %v273 = vmul.f32 %v265, %v271
      %v274 = vmul.f32 %v266, %v271
      %v275 = vld [vmem:[%s4] sm:$0xff]
      %277 = vset.pattern.permute.xlu0 0
      %278 = vperm.xlu0 %277, %v275
      %v279 = vpop.permute.xlu0 %278
      %v281 = vadd.f32 %v273, %v279
      %v282 = vadd.f32 %v274, %v279
      %v283 = vmax.f32 %v281, 0.0
      %v284 = vmax.f32 %v282, 0.0
      %285 = vst [vmem:[#allocation2] sm:$0xf] 0
      %286 = vst [vmem:[#allocation2 + $0xc] sm:$0xf] 0
      %v287 = vpack.c.bf16 %v283, %v283
      %v288 = vpack.c.bf16 %v284, %v284
      %v291 = vunpack.c.l.b16 %v287
      %v292 = vunpack.c.l.b16 %v288
      %v293 = vpack.c.b16 %v292, %v291
      %295 = vst [vmem:[#allocation2 + $0x4] sm:$0xff] %v293
      %v296 = vld [vmem:[#allocation2] sm:$0xff]
      %v297 = vld [vmem:[#allocation2 + $0x8] sm:$0xf]
      %v298 = vld [vmem:[%s1] sm:$0xf]
      %s299 = scalar_lea.vmem %s1, 12
      %v300 = vld [vmem:[%s299] sm:$0xf]
      %v303 = vunpack.c.l.b16 %v296
      %v304 = vunpack.c.h.b16 %v296
      %v305 = vunpack.c.l.b16 %v297
      %v306 = vpack.c.b16 %v303, %v303
      %v307 = vpack.c.b16 %v304, %v304
      %v308 = vpack.c.b16 %v305, %v305
      %309 = vrot.lane.b32.xlu0 %v306, 1
      %v310 = vpop.permute.xlu0 %309
      %311 = vrot.lane.b32.xlu0 %v307, 1
      %v312 = vpop.permute.xlu0 %311
      %313 = vrot.lane.b32.xlu0 %v308, 1
      %v314 = vpop.permute.xlu0 %313
      %vm315 = vcmask 7168
      %v316 = vsel %vm315, %v310, %v312
      %v317 = vsel %vm315, %v312, %v314
      %vm318 = vcmask 64512
      %v320 = vsel %vm318, %v300, 0
      %vm322 = vcmask 1043456
      %v324 = vsel %vm322, %v316, 0
      %v327 = vsel %vm322, %v317, 0
      %329 = vmatprep.subr.bf16.mxu0 0
      %330 = vmatpush1.bf16.msra.mxu0 0
      %331 = vmatprep.subr.bf16.mxu0 0
      %332 = vmatpush1.bf16.msra.mxu0 0
      %333 = vmatprep.subr.bf16.mxu0 0
      %334 = vmatpush1.bf16.msra.mxu0 0
      %335 = vmatprep.subr.bf16.mxu0 0
      %336 = vmatpush1.bf16.msra.mxu0 0
      %337 = vmatprep.subr.bf16.mxu0 0
      %338 = vmatpush1.bf16.msra.mxu0 0
      %339 = vmatprep.subr.bf16.mxu0 0
      %340 = vmatpush1.bf16.msra.mxu0 0
      %341 = vmatprep.subr.bf16.mxu0 0
      %342 = vmatpush1.bf16.msra.mxu0 0
      %343 = vmatprep.subr.bf16.mxu0 %v327
      %344 = vmatpush1.bf16.msra.mxu0 %v324
      %345 = vmatprep.subr.bf16.mxu0 0
      %346 = vmatpush2.bf16.msra.mxu0 0
      %347 = vmatprep.subr.bf16.mxu0 0
      %348 = vmatpush2.bf16.msra.mxu0 0
      %349 = vmatprep.subr.bf16.mxu0 0
      %350 = vmatpush2.bf16.msra.mxu0 0
      %351 = vmatprep.subr.bf16.mxu0 0
      %352 = vmatpush2.bf16.msra.mxu0 0
      %353 = vmatprep.subr.bf16.mxu0 0
      %354 = vmatpush2.bf16.msra.mxu0 0
      %355 = vmatprep.subr.bf16.mxu0 0
      %356 = vmatpush2.bf16.msra.mxu0 0
      %357 = vmatprep.subr.bf16.mxu0 0
      %358 = vmatpush2.bf16.msra.mxu0 0
      %359 = vmatprep.subr.bf16.mxu0 0
      %360 = vmatpush2.bf16.msra.mxu0 0
      %361 = vmatprep.mubr.bf16.mxu0 0
      %362 = vmatmul.mubr.bf16.gmra.mxu0 %v320
      %v363 = vpop.f32.mrf.mxu0
      %v364 = vadd.f32 0.0, %v363
      %v365 = vpop.f32.mrf.mxu0
      %v366 = vadd.f32 0.0, %v365
      %v367 = vpop.f32.mrf.mxu0
      %v368 = vpop.f32.mrf.mxu0
      %369 = vdwg.mxu0
      %370 = vrot.lane.b32.xlu0 %v306, 17
      %v371 = vpop.permute.xlu0 %370
      %372 = vrot.lane.b32.xlu0 %v307, 17
      %v373 = vpop.permute.xlu0 %372
      %374 = vrot.lane.b32.xlu0 %v308, 17
      %v375 = vpop.permute.xlu0 %374
      %vm376 = vcmask 138240
      %v377 = vsel %vm376, %v371, %v373
      %v378 = vsel %vm376, %v373, %v375
      %v380 = vsel %vm318, %v298, 0
      %v383 = vsel %vm322, %v377, 0
      %v386 = vsel %vm322, %v378, 0
      %388 = vmatprep.subr.bf16.mxu0 0
      %389 = vmatpush1.bf16.msra.mxu0 0
      %390 = vmatprep.subr.bf16.mxu0 0
      %391 = vmatpush1.bf16.msra.mxu0 0
      %392 = vmatprep.subr.bf16.mxu0 0
      %393 = vmatpush1.bf16.msra.mxu0 0
      %394 = vmatprep.subr.bf16.mxu0 0
      %395 = vmatpush1.bf16.msra.mxu0 0
      %396 = vmatprep.subr.bf16.mxu0 0
      %397 = vmatpush1.bf16.msra.mxu0 0
      %398 = vmatprep.subr.bf16.mxu0 0
      %399 = vmatpush1.bf16.msra.mxu0 0
      %400 = vmatprep.subr.bf16.mxu0 0
      %401 = vmatpush1.bf16.msra.mxu0 0
      %402 = vmatprep.subr.bf16.mxu0 %v386
      %403 = vmatpush1.bf16.msra.mxu0 %v383
      %404 = vmatprep.subr.bf16.mxu0 0
      %405 = vmatpush2.bf16.msra.mxu0 0
      %406 = vmatprep.subr.bf16.mxu0 0
      %407 = vmatpush2.bf16.msra.mxu0 0
      %408 = vmatprep.subr.bf16.mxu0 0
      %409 = vmatpush2.bf16.msra.mxu0 0
      %410 = vmatprep.subr.bf16.mxu0 0
      %411 = vmatpush2.bf16.msra.mxu0 0
      %412 = vmatprep.subr.bf16.mxu0 0
      %413 = vmatpush2.bf16.msra.mxu0 0
      %414 = vmatprep.subr.bf16.mxu0 0
      %415 = vmatpush2.bf16.msra.mxu0 0
      %416 = vmatprep.subr.bf16.mxu0 0
      %417 = vmatpush2.bf16.msra.mxu0 0
      %418 = vmatprep.subr.bf16.mxu0 0
      %419 = vmatpush2.bf16.msra.mxu0 0
      %420 = vmatprep.mubr.bf16.mxu0 0
      %421 = vmatmul.mubr.bf16.gmra.mxu0 %v380
      %v422 = vpop.f32.mrf.mxu0
      %v423 = vadd.f32 %v364, %v422
      %v424 = vpop.f32.mrf.mxu0
      %v425 = vadd.f32 %v366, %v424
      %v426 = vpop.f32.mrf.mxu0
      %v427 = vpop.f32.mrf.mxu0
      %428 = vdwg.mxu0
      %v429 = vld [vmem:[#allocation2 + $0x4] sm:$0xff]
      %v430 = vld [vmem:[#allocation2 + $0xc] sm:$0xf]
      %s431 = scalar_lea.vmem %s1, 24
      %v432 = vld [vmem:[%s431] sm:$0xf]
      %v435 = vunpack.c.l.b16 %v429
      %v436 = vunpack.c.h.b16 %v429
      %v437 = vunpack.c.l.b16 %v430
      %v438 = vpack.c.b16 %v435, %v435
      %v439 = vpack.c.b16 %v436, %v436
      %v440 = vpack.c.b16 %v437, %v437
      %441 = vrot.lane.b32.xlu0 %v438, 113
      %v442 = vpop.permute.xlu0 %441
      %443 = vrot.lane.b32.xlu0 %v439, 113
      %v444 = vpop.permute.xlu0 %443
      %445 = vrot.lane.b32.xlu0 %v440, 113
      %v446 = vpop.permute.xlu0 %445
      %vm447 = vcmask 924672
      %v448 = vsel %vm447, %v442, %v444
      %v449 = vsel %vm447, %v444, %v446
      %v451 = vsel %vm318, %v432, 0
      %v454 = vsel %vm322, %v448, 0
      %v457 = vsel %vm322, %v449, 0
      %459 = vmatprep.subr.bf16.mxu0 0
      %460 = vmatpush1.bf16.msra.mxu0 0
      %461 = vmatprep.subr.bf16.mxu0 0
      %462 = vmatpush1.bf16.msra.mxu0 0
      %463 = vmatprep.subr.bf16.mxu0 0
      %464 = vmatpush1.bf16.msra.mxu0 0
      %465 = vmatprep.subr.bf16.mxu0 0
      %466 = vmatpush1.bf16.msra.mxu0 0
      %467 = vmatprep.subr.bf16.mxu0 0
      %468 = vmatpush1.bf16.msra.mxu0 0
      %469 = vmatprep.subr.bf16.mxu0 0
      %470 = vmatpush1.bf16.msra.mxu0 0
      %471 = vmatprep.subr.bf16.mxu0 0
      %472 = vmatpush1.bf16.msra.mxu0 0
      %473 = vmatprep.subr.bf16.mxu0 %v457
      %474 = vmatpush1.bf16.msra.mxu0 %v454
      %475 = vmatprep.subr.bf16.mxu0 0
      %476 = vmatpush2.bf16.msra.mxu0 0
      %477 = vmatprep.subr.bf16.mxu0 0
      %478 = vmatpush2.bf16.msra.mxu0 0
      %479 = vmatprep.subr.bf16.mxu0 0
      %480 = vmatpush2.bf16.msra.mxu0 0
      %481 = vmatprep.subr.bf16.mxu0 0
      %482 = vmatpush2.bf16.msra.mxu0 0
      %483 = vmatprep.subr.bf16.mxu0 0
      %484 = vmatpush2.bf16.msra.mxu0 0
      %485 = vmatprep.subr.bf16.mxu0 0
      %486 = vmatpush2.bf16.msra.mxu0 0
      %487 = vmatprep.subr.bf16.mxu0 0
      %488 = vmatpush2.bf16.msra.mxu0 0
      %489 = vmatprep.subr.bf16.mxu0 0
      %490 = vmatpush2.bf16.msra.mxu0 0
      %491 = vmatprep.mubr.bf16.mxu0 0
      %492 = vmatmul.mubr.bf16.gmra.mxu0 %v451
      %v493 = vpop.f32.mrf.mxu0
      %v494 = vadd.f32 0.0, %v493
      %v495 = vpop.f32.mrf.mxu0
      %v496 = vadd.f32 0.0, %v495
      %v497 = vpop.f32.mrf.mxu0
      %v498 = vpop.f32.mrf.mxu0
      %499 = vdwg.mxu0
      %v500 = vadd.f32 %v423, %v494
      %v501 = vadd.f32 %v425, %v496
      %v502 = vld [vmem:[%s2] ss:$2 sm:$0x3]
      %v504 = vlaneseq
      %v505 = vshrl.u32 %v504, 7
      %v506 = vsub.s32 0, %v505
      %v507 = vrot.slane %v502, %v506
      %v508 = vlaneseq
      %v509 = vshrl.u32 %v508, 7
      %v510 = vsub.s32 1, %v509
      %v511 = vrot.slane %v502, %v510
      %v514 = vmul.f32 %v500, %v507
      %v515 = vmul.f32 %v501, %v511
      %v516 = vadd.f32 %v514, 0.0
      %v517 = vadd.f32 %v515, 0.0
      %s518 = scalar_lea.vmem %s1, 4
      %v519 = vld [vmem:[%s518] sm:$0xf]
      %v520 = vld [vmem:[#allocation2 + $0x4] sm:$0xff]
      %s521 = scalar_lea.vmem %s1, 16
      %v522 = vld [vmem:[%s521] sm:$0xf]
      %v524 = vunpack.c.l.b16 %v520
      %v525 = vunpack.c.h.b16 %v520
      %v526 = vpack.c.b16 %v524, %v524
      %v527 = vpack.c.b16 %v525, %v525
      %v529 = vsel %vm318, %v522, 0
      %v532 = vsel %vm322, %v526, 0
      %v535 = vsel %vm322, %v527, 0
      %537 = vmatprep.subr.bf16.mxu0 0
      %538 = vmatpush1.bf16.msra.mxu0 0
      %539 = vmatprep.subr.bf16.mxu0 0
      %540 = vmatpush1.bf16.msra.mxu0 0
      %541 = vmatprep.subr.bf16.mxu0 0
      %542 = vmatpush1.bf16.msra.mxu0 0
      %543 = vmatprep.subr.bf16.mxu0 0
      %544 = vmatpush1.bf16.msra.mxu0 0
      %545 = vmatprep.subr.bf16.mxu0 0
      %546 = vmatpush1.bf16.msra.mxu0 0
      %547 = vmatprep.subr.bf16.mxu0 0
      %548 = vmatpush1.bf16.msra.mxu0 0
      %549 = vmatprep.subr.bf16.mxu0 0
      %550 = vmatpush1.bf16.msra.mxu0 0
      %551 = vmatprep.subr.bf16.mxu0 %v535
      %552 = vmatpush1.bf16.msra.mxu0 %v532
      %553 = vmatprep.subr.bf16.mxu0 0
      %554 = vmatpush2.bf16.msra.mxu0 0
      %555 = vmatprep.subr.bf16.mxu0 0
      %556 = vmatpush2.bf16.msra.mxu0 0
      %557 = vmatprep.subr.bf16.mxu0 0
      %558 = vmatpush2.bf16.msra.mxu0 0
      %559 = vmatprep.subr.bf16.mxu0 0
      %560 = vmatpush2.bf16.msra.mxu0 0
      %561 = vmatprep.subr.bf16.mxu0 0
      %562 = vmatpush2.bf16.msra.mxu0 0
      %563 = vmatprep.subr.bf16.mxu0 0
      %564 = vmatpush2.bf16.msra.mxu0 0
      %565 = vmatprep.subr.bf16.mxu0 0
      %566 = vmatpush2.bf16.msra.mxu0 0
      %567 = vmatprep.subr.bf16.mxu0 0
      %568 = vmatpush2.bf16.msra.mxu0 0
      %569 = vmatprep.mubr.bf16.mxu0 0
      %570 = vmatmul.mubr.bf16.gmra.mxu0 %v529
      %v571 = vpop.f32.mrf.mxu0
      %v572 = vadd.f32 0.0, %v571
      %v573 = vpop.f32.mrf.mxu0
      %v574 = vadd.f32 0.0, %v573
      %v575 = vpop.f32.mrf.mxu0
      %v576 = vpop.f32.mrf.mxu0
      %577 = vdwg.mxu0
      %578 = vrot.lane.b32.xlu0 %v306, 16
      %v579 = vpop.permute.xlu0 %578
      %580 = vrot.lane.b32.xlu0 %v307, 16
      %v581 = vpop.permute.xlu0 %580
      %582 = vrot.lane.b32.xlu0 %v308, 16
      %v583 = vpop.permute.xlu0 %582
      %vm584 = vcmask 130048
      %v585 = vsel %vm584, %v579, %v581
      %v586 = vsel %vm584, %v581, %v583
      %v588 = vsel %vm318, %v519, 0
      %v591 = vsel %vm322, %v585, 0
      %v594 = vsel %vm322, %v586, 0
      %596 = vmatprep.subr.bf16.mxu0 0
      %597 = vmatpush1.bf16.msra.mxu0 0
      %598 = vmatprep.subr.bf16.mxu0 0
      %599 = vmatpush1.bf16.msra.mxu0 0
      %600 = vmatprep.subr.bf16.mxu0 0
      %601 = vmatpush1.bf16.msra.mxu0 0
      %602 = vmatprep.subr.bf16.mxu0 0
      %603 = vmatpush1.bf16.msra.mxu0 0
      %604 = vmatprep.subr.bf16.mxu0 0
      %605 = vmatpush1.bf16.msra.mxu0 0
      %606 = vmatprep.subr.bf16.mxu0 0
      %607 = vmatpush1.bf16.msra.mxu0 0
      %608 = vmatprep.subr.bf16.mxu0 0
      %609 = vmatpush1.bf16.msra.mxu0 0
      %610 = vmatprep.subr.bf16.mxu0 %v594
      %611 = vmatpush1.bf16.msra.mxu0 %v591
      %612 = vmatprep.subr.bf16.mxu0 0
      %613 = vmatpush2.bf16.msra.mxu0 0
      %614 = vmatprep.subr.bf16.mxu0 0
      %615 = vmatpush2.bf16.msra.mxu0 0
      %616 = vmatprep.subr.bf16.mxu0 0
      %617 = vmatpush2.bf16.msra.mxu0 0
      %618 = vmatprep.subr.bf16.mxu0 0
      %619 = vmatpush2.bf16.msra.mxu0 0
      %620 = vmatprep.subr.bf16.mxu0 0
      %621 = vmatpush2.bf16.msra.mxu0 0
      %622 = vmatprep.subr.bf16.mxu0 0
      %623 = vmatpush2.bf16.msra.mxu0 0
      %624 = vmatprep.subr.bf16.mxu0 0
      %625 = vmatpush2.bf16.msra.mxu0 0
      %626 = vmatprep.subr.bf16.mxu0 0
      %627 = vmatpush2.bf16.msra.mxu0 0
      %628 = vmatprep.mubr.bf16.mxu0 0
      %629 = vmatmul.mubr.bf16.gmra.mxu0 %v588
      %v630 = vpop.f32.mrf.mxu0
      %v631 = vadd.f32 %v572, %v630
      %v632 = vpop.f32.mrf.mxu0
      %v633 = vadd.f32 %v574, %v632
      %v634 = vpop.f32.mrf.mxu0
      %v635 = vpop.f32.mrf.mxu0
      %636 = vdwg.mxu0
      %s637 = scalar_lea.vmem %s1, 28
      %v638 = vld [vmem:[%s637] sm:$0xf]
      %639 = vrot.lane.b32.xlu0 %v438, 112
      %v640 = vpop.permute.xlu0 %639
      %641 = vrot.lane.b32.xlu0 %v439, 112
      %v642 = vpop.permute.xlu0 %641
      %643 = vrot.lane.b32.xlu0 %v440, 112
      %v644 = vpop.permute.xlu0 %643
      %vm645 = vcmask 916480
      %v646 = vsel %vm645, %v640, %v642
      %v647 = vsel %vm645, %v642, %v644
      %v649 = vsel %vm318, %v638, 0
      %v652 = vsel %vm322, %v646, 0
      %v655 = vsel %vm322, %v647, 0
      %657 = vmatprep.subr.bf16.mxu0 0
      %658 = vmatpush1.bf16.msra.mxu0 0
      %659 = vmatprep.subr.bf16.mxu0 0
      %660 = vmatpush1.bf16.msra.mxu0 0
      %661 = vmatprep.subr.bf16.mxu0 0
      %662 = vmatpush1.bf16.msra.mxu0 0
      %663 = vmatprep.subr.bf16.mxu0 0
      %664 = vmatpush1.bf16.msra.mxu0 0
      %665 = vmatprep.subr.bf16.mxu0 0
      %666 = vmatpush1.bf16.msra.mxu0 0
      %667 = vmatprep.subr.bf16.mxu0 0
      %668 = vmatpush1.bf16.msra.mxu0 0
      %669 = vmatprep.subr.bf16.mxu0 0
      %670 = vmatpush1.bf16.msra.mxu0 0
      %671 = vmatprep.subr.bf16.mxu0 %v655
      %672 = vmatpush1.bf16.msra.mxu0 %v652
      %673 = vmatprep.subr.bf16.mxu0 0
      %674 = vmatpush2.bf16.msra.mxu0 0
      %675 = vmatprep.subr.bf16.mxu0 0
      %676 = vmatpush2.bf16.msra.mxu0 0
      %677 = vmatprep.subr.bf16.mxu0 0
      %678 = vmatpush2.bf16.msra.mxu0 0
      %679 = vmatprep.subr.bf16.mxu0 0
      %680 = vmatpush2.bf16.msra.mxu0 0
      %681 = vmatprep.subr.bf16.mxu0 0
      %682 = vmatpush2.bf16.msra.mxu0 0
      %683 = vmatprep.subr.bf16.mxu0 0
      %684 = vmatpush2.bf16.msra.mxu0 0
      %685 = vmatprep.subr.bf16.mxu0 0
      %686 = vmatpush2.bf16.msra.mxu0 0
      %687 = vmatprep.subr.bf16.mxu0 0
      %688 = vmatpush2.bf16.msra.mxu0 0
      %689 = vmatprep.mubr.bf16.mxu0 0
      %690 = vmatmul.mubr.bf16.gmra.mxu0 %v649
      %v691 = vpop.f32.mrf.mxu0
      %v692 = vadd.f32 0.0, %v691
      %v693 = vpop.f32.mrf.mxu0
      %v694 = vadd.f32 0.0, %v693
      %v695 = vpop.f32.mrf.mxu0
      %v696 = vpop.f32.mrf.mxu0
      %697 = vdwg.mxu0
      %v698 = vadd.f32 %v631, %v692
      %v699 = vadd.f32 %v633, %v694
      %v700 = vadd.f32 %v516, %v698
      %v701 = vadd.f32 %v517, %v699
      %s702 = scalar_lea.vmem %s1, 8
      %v703 = vld [vmem:[%s702] sm:$0xf]
      %s704 = scalar_lea.vmem %s1, 20
      %v705 = vld [vmem:[%s704] sm:$0xf]
      %706 = vrot.lane.b32.xlu0 %v438, 127
      %v707 = vpop.permute.xlu0 %706
      %708 = vrot.lane.b32.xlu0 %v439, 127
      %v709 = vpop.permute.xlu0 %708
      %710 = vrot.lane.b32.xlu0 %v440, 127
      %v711 = vpop.permute.xlu0 %710
      %vm712 = vcmask 1039360
      %v713 = vsel %vm712, %v707, %v709
      %v714 = vsel %vm712, %v709, %v711
      %v716 = vsel %vm318, %v705, 0
      %v719 = vsel %vm322, %v713, 0
      %v722 = vsel %vm322, %v714, 0
      %724 = vmatprep.subr.bf16.mxu0 0
      %725 = vmatpush1.bf16.msra.mxu0 0
      %726 = vmatprep.subr.bf16.mxu0 0
      %727 = vmatpush1.bf16.msra.mxu0 0
      %728 = vmatprep.subr.bf16.mxu0 0
      %729 = vmatpush1.bf16.msra.mxu0 0
      %730 = vmatprep.subr.bf16.mxu0 0
      %731 = vmatpush1.bf16.msra.mxu0 0
      %732 = vmatprep.subr.bf16.mxu0 0
      %733 = vmatpush1.bf16.msra.mxu0 0
      %734 = vmatprep.subr.bf16.mxu0 0
      %735 = vmatpush1.bf16.msra.mxu0 0
      %736 = vmatprep.subr.bf16.mxu0 0
      %737 = vmatpush1.bf16.msra.mxu0 0
      %738 = vmatprep.subr.bf16.mxu0 %v722
      %739 = vmatpush1.bf16.msra.mxu0 %v719
      %740 = vmatprep.subr.bf16.mxu0 0
      %741 = vmatpush2.bf16.msra.mxu0 0
      %742 = vmatprep.subr.bf16.mxu0 0
      %743 = vmatpush2.bf16.msra.mxu0 0
      %744 = vmatprep.subr.bf16.mxu0 0
      %745 = vmatpush2.bf16.msra.mxu0 0
      %746 = vmatprep.subr.bf16.mxu0 0
      %747 = vmatpush2.bf16.msra.mxu0 0
      %748 = vmatprep.subr.bf16.mxu0 0
      %749 = vmatpush2.bf16.msra.mxu0 0
      %750 = vmatprep.subr.bf16.mxu0 0
      %751 = vmatpush2.bf16.msra.mxu0 0
      %752 = vmatprep.subr.bf16.mxu0 0
      %753 = vmatpush2.bf16.msra.mxu0 0
      %754 = vmatprep.subr.bf16.mxu0 0
      %755 = vmatpush2.bf16.msra.mxu0 0
      %756 = vmatprep.mubr.bf16.mxu0 0
      %757 = vmatmul.mubr.bf16.gmra.mxu0 %v716
      %v758 = vpop.f32.mrf.mxu0
      %v759 = vadd.f32 0.0, %v758
      %v760 = vpop.f32.mrf.mxu0
      %v761 = vadd.f32 0.0, %v760
      %v762 = vpop.f32.mrf.mxu0
      %v763 = vpop.f32.mrf.mxu0
      %764 = vdwg.mxu0
      %765 = vrot.lane.b32.xlu0 %v306, 15
      %v766 = vpop.permute.xlu0 %765
      %767 = vrot.lane.b32.xlu0 %v307, 15
      %v768 = vpop.permute.xlu0 %767
      %769 = vrot.lane.b32.xlu0 %v308, 15
      %v770 = vpop.permute.xlu0 %769
      %vm771 = vcmask 121856
      %v772 = vsel %vm771, %v766, %v768
      %v773 = vsel %vm771, %v768, %v770
      %v775 = vsel %vm318, %v703, 0
      %v778 = vsel %vm322, %v772, 0
      %v781 = vsel %vm322, %v773, 0
      %783 = vmatprep.subr.bf16.mxu0 0
      %784 = vmatpush1.bf16.msra.mxu0 0
      %785 = vmatprep.subr.bf16.mxu0 0
      %786 = vmatpush1.bf16.msra.mxu0 0
      %787 = vmatprep.subr.bf16.mxu0 0
      %788 = vmatpush1.bf16.msra.mxu0 0
      %789 = vmatprep.subr.bf16.mxu0 0
      %790 = vmatpush1.bf16.msra.mxu0 0
      %791 = vmatprep.subr.bf16.mxu0 0
      %792 = vmatpush1.bf16.msra.mxu0 0
      %793 = vmatprep.subr.bf16.mxu0 0
      %794 = vmatpush1.bf16.msra.mxu0 0
      %795 = vmatprep.subr.bf16.mxu0 0
      %796 = vmatpush1.bf16.msra.mxu0 0
      %797 = vmatprep.subr.bf16.mxu0 %v781
      %798 = vmatpush1.bf16.msra.mxu0 %v778
      %799 = vmatprep.subr.bf16.mxu0 0
      %800 = vmatpush2.bf16.msra.mxu0 0
      %801 = vmatprep.subr.bf16.mxu0 0
      %802 = vmatpush2.bf16.msra.mxu0 0
      %803 = vmatprep.subr.bf16.mxu0 0
      %804 = vmatpush2.bf16.msra.mxu0 0
      %805 = vmatprep.subr.bf16.mxu0 0
      %806 = vmatpush2.bf16.msra.mxu0 0
      %807 = vmatprep.subr.bf16.mxu0 0
      %808 = vmatpush2.bf16.msra.mxu0 0
      %809 = vmatprep.subr.bf16.mxu0 0
      %810 = vmatpush2.bf16.msra.mxu0 0
      %811 = vmatprep.subr.bf16.mxu0 0
      %812 = vmatpush2.bf16.msra.mxu0 0
      %813 = vmatprep.subr.bf16.mxu0 0
      %814 = vmatpush2.bf16.msra.mxu0 0
      %815 = vmatprep.mubr.bf16.mxu0 0
      %816 = vmatmul.mubr.bf16.gmra.mxu0 %v775
      %v817 = vpop.f32.mrf.mxu0
      %v818 = vadd.f32 %v759, %v817
      %v819 = vpop.f32.mrf.mxu0
      %v820 = vadd.f32 %v761, %v819
      %v821 = vpop.f32.mrf.mxu0
      %v822 = vpop.f32.mrf.mxu0
      %823 = vdwg.mxu0
      %s824 = scalar_lea.vmem %s1, 32
      %v825 = vld [vmem:[%s824] sm:$0xf]
      %826 = vrot.lane.b32.xlu0 %v438, 111
      %v827 = vpop.permute.xlu0 %826
      %828 = vrot.lane.b32.xlu0 %v439, 111
      %v829 = vpop.permute.xlu0 %828
      %830 = vrot.lane.b32.xlu0 %v440, 111
      %v831 = vpop.permute.xlu0 %830
      %vm832 = vcmask 908288
      %v833 = vsel %vm832, %v827, %v829
      %v834 = vsel %vm832, %v829, %v831
      %v836 = vsel %vm318, %v825, 0
      %v839 = vsel %vm322, %v833, 0
      %v842 = vsel %vm322, %v834, 0
      %844 = vmatprep.subr.bf16.mxu0 0
      %845 = vmatpush1.bf16.msra.mxu0 0
      %846 = vmatprep.subr.bf16.mxu0 0
      %847 = vmatpush1.bf16.msra.mxu0 0
      %848 = vmatprep.subr.bf16.mxu0 0
      %849 = vmatpush1.bf16.msra.mxu0 0
      %850 = vmatprep.subr.bf16.mxu0 0
      %851 = vmatpush1.bf16.msra.mxu0 0
      %852 = vmatprep.subr.bf16.mxu0 0
      %853 = vmatpush1.bf16.msra.mxu0 0
      %854 = vmatprep.subr.bf16.mxu0 0
      %855 = vmatpush1.bf16.msra.mxu0 0
      %856 = vmatprep.subr.bf16.mxu0 0
      %857 = vmatpush1.bf16.msra.mxu0 0
      %858 = vmatprep.subr.bf16.mxu0 %v842
      %859 = vmatpush1.bf16.msra.mxu0 %v839
      %860 = vmatprep.subr.bf16.mxu0 0
      %861 = vmatpush2.bf16.msra.mxu0 0
      %862 = vmatprep.subr.bf16.mxu0 0
      %863 = vmatpush2.bf16.msra.mxu0 0
      %864 = vmatprep.subr.bf16.mxu0 0
      %865 = vmatpush2.bf16.msra.mxu0 0
      %866 = vmatprep.subr.bf16.mxu0 0
      %867 = vmatpush2.bf16.msra.mxu0 0
      %868 = vmatprep.subr.bf16.mxu0 0
      %869 = vmatpush2.bf16.msra.mxu0 0
      %870 = vmatprep.subr.bf16.mxu0 0
      %871 = vmatpush2.bf16.msra.mxu0 0
      %872 = vmatprep.subr.bf16.mxu0 0
      %873 = vmatpush2.bf16.msra.mxu0 0
      %874 = vmatprep.subr.bf16.mxu0 0
      %875 = vmatpush2.bf16.msra.mxu0 0
      %876 = vmatprep.mubr.bf16.mxu0 0
      %877 = vmatmul.mubr.bf16.gmra.mxu0 %v836
      %v878 = vpop.f32.mrf.mxu0
      %v879 = vadd.f32 0.0, %v878
      %v880 = vpop.f32.mrf.mxu0
      %v881 = vadd.f32 0.0, %v880
      %v882 = vpop.f32.mrf.mxu0
      %v883 = vpop.f32.mrf.mxu0
      %884 = vdwg.mxu0
      %v885 = vadd.f32 %v818, %v879
      %v886 = vadd.f32 %v820, %v881
      %s887 = scalar_lea.vmem %s2, 1
      %v888 = vld [vmem:[%s887] ss:$2 sm:$0x3]
      %v890 = vlaneseq
      %v891 = vshrl.u32 %v890, 7
      %v892 = vsub.s32 0, %v891
      %v893 = vrot.slane %v888, %v892
      %v894 = vlaneseq
      %v895 = vshrl.u32 %v894, 7
      %v896 = vsub.s32 1, %v895
      %v897 = vrot.slane %v888, %v896
      %v900 = vmul.f32 %v885, %v893
      %v901 = vmul.f32 %v886, %v897
      %v902 = vadd.f32 %v700, %v900
      %v903 = vadd.f32 %v701, %v901
      %v904 = vpack.c.bf16 %v902, %v902
      %v905 = vpack.c.bf16 %v903, %v903
      %v908 = vunpack.c.l.b16 %v904
      %v909 = vunpack.c.l.b16 %v905
      %v910 = vpack.c.b16 %v909, %v908
      %912 = vst [vmem:[%s258] sm:$0xff] %v910
      %v913 = vadd.f32 %v902, %v903
      %914 = vadd.xlane.f32.xlu0 %v913
      %v915 = vpop.xlane.xlu0 %914
      %vm916 = vcmask 7168
      %917 = vst.msk [vmem:[%s262] sm:$0xff] %vm916, %v915
      %v918 = vmul.f32 %v902, %v902
      %v919 = vmul.f32 %v903, %v903
      %v920 = vadd.f32 %v918, %v919
      %921 = vadd.xlane.f32.xlu0 %v920
      %v922 = vpop.xlane.xlu0 %921
      %vm923 = vcmask 15368
      %924 = vst.msk [vmem:[%s262] sm:$0xff] %vm923, %v922
      %p925 = scmp.lt.s32.totalorder %s18, 1
      %s926 = scalar_select %p925, %s18, 1
      %s927 = smul.addr %s926, 2
      %s928 = smul.addr %s927, 4
      %s929 = scalar_lea.vmem %s5, %s928
      %p930 = scmp.lt.s32.totalorder %s18, 1
      %s931 = scalar_select %p930, %s18, 1
      %s932 = smul.addr %s931, 8
      %s933 = scalar_lea.vmem %s6, %s932
      // Predicated region
      $region41: #{double_conv.4} parent=39 // pred_check
        %p934 = pneg %p146
      $region42: #{double_conv.4} parent=39 // pred_check_branch
        %936 = sbr.rel (%p934) target = $region44
      $region43: #{double_conv.4} parent=39 // pred_region
        _
      $region44: #{double_conv.4} parent=39 // pred_fallthru
        _
      // Predicated region
      $region45: #{double_conv.4} parent=39 // pred_check
        %p937 = pneg %p172
      $region46: #{double_conv.4} parent=39 // pred_check_branch
        %939 = sbr.rel (%p937) target = $region48
      $region47: #{double_conv.4} parent=39 // pred_region
        _
      $region48: #{double_conv.4} parent=39 // pred_fallthru
        _
    $region40: #{double_conv.4} parent=5 // pred_fallthru
      _
    %p940 = scmp.le.s32.totalorder 2, %s13
    // Predicated region
    $region49: #{double_conv.4} parent=5 // pred_check
      %p941 = pneg %p940
    $region50: #{double_conv.4} parent=5 // pred_check_branch
      %943 = sbr.rel (%p941) target = $region52
    $region51: #{double_conv.4} parent=5 // pred_region
      %s944 = ssub.s32 %s13, 2
      // Predicated region
      $region53: #{double_conv.4} parent=51 // pred_check
        %p945 = pneg %p152
      $region54: #{double_conv.4} parent=51 // pred_check_branch
        %947 = sbr.rel (%p945) target = $region56
      $region55: #{double_conv.4} parent=51 // pred_region
        %p948 = scmp.lt.s32.totalorder %s19, 1
        %s949 = scalar_select %p948, %s19, 1
        %s950 = smul.addr %s949, 2
        %s951 = smul.addr %s950, 4
        %s952 = scalar_lea.vmem %s5, %s951
      $region56: #{double_conv.4} parent=51 // pred_fallthru
        _
      // Predicated region
      $region57: #{double_conv.4} parent=51 // pred_check
        %p953 = pneg %p178
      $region58: #{double_conv.4} parent=51 // pred_check_branch
        %955 = sbr.rel (%p953) target = $region60
      $region59: #{double_conv.4} parent=51 // pred_region
        %p956 = scmp.lt.s32.totalorder %s19, 1
        %s957 = scalar_select %p956, %s19, 1
        %s958 = smul.addr %s957, 8
        %s959 = scalar_lea.vmem %s6, %s958
      $region60: #{double_conv.4} parent=51 // pred_fallthru
        _
    $region52: #{double_conv.4} parent=5 // pred_fallthru
      _
  $region6: #{double_conv.4} parent=0 // loop_footer
    %s17 = sadd.s32 1, %s13
  $region7: #{double_conv.4} parent=0 // loop_footer_branch
    %12 = sbr.rel target = $region3
  $region8: #{double_conv.4} parent=0 // loop_exit
    _

</llo_original>
